<compile_context>
chip_gen: v6e
topology: v6e:2x2x1
jax: 0.10.0
libtpu: 0.0.40
codegen_flags: <defaults>
</compile_context>

<pallas_src>
import math
import jax
import jax.numpy as jnp
from jax import lax
from jax.experimental import pallas as pl
from jax.experimental.pallas import tpu as pltpu


def _rnn_chunk_kernel(x_ref, wih_ref, whh_ref, b_ref, wout_ref, bout_ref,
                      h_out_ref, y_out_ref, h_carry, h_all):
    """Processes one chunk of Tc time steps for the whole batch."""
    c = pl.program_id(0)
    B, Tc, I = x_ref.shape
    H = whh_ref.shape[0]
    O = wout_ref.shape[1]

    @pl.when(c == 0)
    def _():
        h_carry[...] = jnp.zeros_like(h_carry)

    # --- hoisted input projection: one (B*Tc, I) @ (I, H) matmul per chunk ---
    x_flat = x_ref[...].reshape(B * Tc, I)
    pre = (jnp.dot(x_flat, wih_ref[...], preferred_element_type=jnp.float32)
           + b_ref[...]).reshape(B, Tc, H)

    # --- serial recurrence over the chunk (Tc is a small static constant,
    #     fully unrolled at trace time; only h @ W_hh + tanh on the chain) ---
    whh = whh_ref[...]
    h = h_carry[...]
    for t in range(Tc):
        h = jnp.tanh(pre[:, t, :]
                     + jnp.dot(h, whh, preferred_element_type=jnp.float32))
        h_all[:, t, :] = h
    h_carry[...] = h

    # --- hoisted output head: one (B*Tc, H) @ (H, O) matmul, dense store ---
    y_flat = (jnp.dot(h_all[...].reshape(B * Tc, H), wout_ref[...],
                      preferred_element_type=jnp.float32) + bout_ref[...])
    y_out_ref[...] = y_flat.reshape(B, Tc, O).astype(y_out_ref.dtype)

    # --- final hidden state: written only once, on the last chunk ---
    @pl.when(c == pl.num_programs(0) - 1)
    def _():
        h_out_ref[...] = h.astype(h_out_ref.dtype)


def _pick_time_chunk(T, max_chunk):
    """Chunk length along T: full sequence if it fits, else a sublane-aligned
    (multiple-of-8) divisor of T, else the whole sequence in one chunk."""
    if T <= max_chunk:
        return T
    for tc in range(max_chunk - max_chunk % 8, 0, -8):
        if T % tc == 0:
            return tc
    return T  # no aligned divisor: keep the whole sequence resident


def rnn_forward(x, params, max_time_chunk=32):
    """x: (B, T, I) float32 (batch_first).  Returns (h_state (1,B,H), outs (B,T,O))."""
    w_ih, w_hh, b_ih, b_hh, w_out, b_out = params
    B, T, I = x.shape
    H = w_hh.shape[0]
    O = w_out.shape[0]

    Tc = _pick_time_chunk(T, max_time_chunk)
    n_chunks = T // Tc

    # glue: pre-transposed weights (tiny), folded bias -- no activation transposes.
    wih_t = jnp.transpose(w_ih)          # (I, H)
    whh_t = jnp.transpose(w_hh)          # (H, H)
    wout_t = jnp.transpose(w_out)        # (H, O)
    b2 = (b_ih + b_hh).reshape(1, H)     # folded RNN bias
    bout2 = b_out.reshape(1, O)

    h_last, y = pl.pallas_call(
        _rnn_chunk_kernel,
        out_shape=(jax.ShapeDtypeStruct((B, H), jnp.float32),
                   jax.ShapeDtypeStruct((B, T, O), jnp.float32)),
        grid_spec=pltpu.PrefetchScalarGridSpec(
            num_scalar_prefetch=0,
            grid=(n_chunks,),
            in_specs=[
                pl.BlockSpec((B, Tc, I), lambda c: (0, c, 0)),   # x chunk (batch_first)
                pl.BlockSpec((I, H), lambda c: (0, 0)),          # W_ih^T
                pl.BlockSpec((H, H), lambda c: (0, 0)),          # W_hh^T
                pl.BlockSpec((1, H), lambda c: (0, 0)),          # b_ih + b_hh
                pl.BlockSpec((H, O), lambda c: (0, 0)),          # W_out^T
                pl.BlockSpec((1, O), lambda c: (0, 0)),          # b_out
            ],
            out_specs=[
                pl.BlockSpec((B, H), lambda c: (0, 0)),          # final hidden
                pl.BlockSpec((B, Tc, O), lambda c: (0, c, 0)),   # y chunk (batch_first)
            ],
            scratch_shapes=[
                pltpu.VMEM((B, H), jnp.float32),                 # recurrent carry
                pltpu.VMEM((B, Tc, H), jnp.float32),             # all h_t of the chunk
            ],
        ),
        compiler_params=pltpu.CompilerParams(
            dimension_semantics=("arbitrary",)),   # recurrence over time chunks is serial
    )(x, wih_t, whh_t, b2, wout_t, bout2)

    # TODO(synk): for production sizes, cast weights to bf16 (f32 accumulation)
    # on v6e/v7x and pad B to a multiple of 8 / H,O to multiples of 128.
    h_state = h_last[None]               # (1, B, H)  (num_layers dim)
    return h_state, y


def _reference(x, params):
    """Pure-JAX reference of the torch forward pass."""
    w_ih, w_hh, b_ih, b_hh, w_out, b_out = params
    B = x.shape[0]
    H = w_hh.shape[0]

    def step(h, x_t):
        h_new = jnp.tanh(x_t @ w_ih.T + b_ih + h @ w_hh.T + b_hh)
        y_t = h_new @ w_out.T + b_out
        return h_new, y_t

    h0 = jnp.zeros((B, H), jnp.float32)
    h_last, ys = lax.scan(step, h0, jnp.transpose(x, (1, 0, 2)))
    return h_last[None], jnp.transpose(ys, (1, 0, 2))


def init_params(key, input_size, hidden_size, output_size):
    """Deterministic init matching the torch module's parameter shapes."""
    ks = jax.random.split(key, 6)
    k_rnn = 1.0 / math.sqrt(hidden_size)
    k_lin = 1.0 / math.sqrt(hidden_size)
    w_ih = jax.random.uniform(ks[0], (hidden_size, input_size), jnp.float32, -k_rnn, k_rnn)
    w_hh = jax.random.uniform(ks[1], (hidden_size, hidden_size), jnp.float32, -k_rnn, k_rnn)
    b_ih = jax.random.uniform(ks[2], (hidden_size,), jnp.float32, -k_rnn, k_rnn)
    b_hh = jax.random.uniform(ks[3], (hidden_size,), jnp.float32, -k_rnn, k_rnn)
    w_out = jax.random.uniform(ks[4], (output_size, hidden_size), jnp.float32, -k_lin, k_lin)
    b_out = jax.random.uniform(ks[5], (output_size,), jnp.float32, -k_lin, k_lin)
    return (w_ih, w_hh, b_ih, b_hh, w_out, b_out)


if __name__ == "__main__":
    B, T, I, H, O = 4, 24, 16, 32, 8   # T=24 with Tc=8 -> 3 chunks (exercises the carry)

    key = jax.random.PRNGKey(0)
    k_x, k_p = jax.random.split(key)
    x = jax.random.normal(k_x, (B, T, I), jnp.float32)
    params = init_params(k_p, I, H, O)

    h_state, outs = rnn_forward(x, params, max_time_chunk=8)
    h_state = jax.block_until_ready(h_state)
    outs = jax.block_until_ready(outs)

    assert h_state.shape == (1, B, H)
    assert outs.shape == (B, T, O)

    h_ref, y_ref = _reference(x, params)
    assert jnp.allclose(h_state, h_ref, rtol=1e-5, atol=1e-5)
    assert jnp.allclose(outs, y_ref, rtol=1e-5, atol=1e-5)

    print("KERNEL_OK")
</pallas_src>

<mosaic_0001>
module attributes {stable_mosaic.version = 11 : i64} {
  func.func @_rnn_chunk_kernel(%arg0: i32, %arg1: memref<4x8x16xf32, #tpu.memory_space<vmem>>, %arg2: memref<16x32xf32, #tpu.memory_space<vmem>>, %arg3: memref<32x32xf32, #tpu.memory_space<vmem>>, %arg4: memref<1x32xf32, #tpu.memory_space<vmem>>, %arg5: memref<32x8xf32, #tpu.memory_space<vmem>>, %arg6: memref<1x8xf32, #tpu.memory_space<vmem>>, %arg7: memref<4x32xf32, #tpu.memory_space<vmem>>, %arg8: memref<4x8x8xf32, #tpu.memory_space<vmem>>, %arg9: memref<4x32xf32, #tpu.memory_space<vmem>>, %arg10: memref<4x8x32xf32, #tpu.memory_space<vmem>>) attributes {dimension_semantics = [#tpu.dimension_semantics<arbitrary>], iteration_bounds = array<i64: 3>, scalar_prefetch = 0 : i64, scratch_operands = 2 : i64, tpu.core_type = #tpu.core_type<tc>, window_params = [{transform_indices = @transform_0, window_bounds = array<i64: 4, 8, 16>}, {pipeline_mode = #tpu.pipeline_mode<synchronous>, transform_indices = @transform_1, window_bounds = array<i64: 16, 32>}, {pipeline_mode = #tpu.pipeline_mode<synchronous>, transform_indices = @transform_2, window_bounds = array<i64: 32, 32>}, {pipeline_mode = #tpu.pipeline_mode<synchronous>, transform_indices = @transform_3, window_bounds = array<i64: 1, 32>}, {pipeline_mode = #tpu.pipeline_mode<synchronous>, transform_indices = @transform_4, window_bounds = array<i64: 32, 8>}, {pipeline_mode = #tpu.pipeline_mode<synchronous>, transform_indices = @transform_5, window_bounds = array<i64: 1, 8>}, {pipeline_mode = #tpu.pipeline_mode<synchronous>, transform_indices = @transform_6, window_bounds = array<i64: 4, 32>}, {transform_indices = @transform_7, window_bounds = array<i64: 4, 8, 8>}]} {
    %c0_i32 = arith.constant 0 : i32
    %0 = arith.cmpi eq, %arg0, %c0_i32 : i32
    %1 = arith.extui %0 : i1 to i32
    %c0_i32_0 = arith.constant 0 : i32
    %2 = arith.cmpi ne, %1, %c0_i32_0 : i32
    scf.if %2 {
      %cst_50 = arith.constant 0.000000e+00 : f32
      %90 = vector.broadcast %cst_50 : f32 to vector<4x32xf32>
      %c0_51 = arith.constant 0 : index
      %c0_52 = arith.constant 0 : index
      %91 = vector.load %arg9[%c0_51, %c0_52] : memref<4x32xf32, #tpu.memory_space<vmem>>, vector<4x32xf32>
      tpu.vector_store %arg9[%c0_51, %c0_52], %90 {strides = array<i32>} : memref<4x32xf32, #tpu.memory_space<vmem>>, vector<4x32xf32>,
    } else {
    }
    %c0 = arith.constant 0 : index
    %c0_1 = arith.constant 0 : index
    %c0_2 = arith.constant 0 : index
    %3 = vector.load %arg1[%c0, %c0_1, %c0_2] : memref<4x8x16xf32, #tpu.memory_space<vmem>>, vector<4x8x16xf32>
    %4 = vector.shape_cast %3 : vector<4x8x16xf32> to vector<32x16xf32>
    %c0_3 = arith.constant 0 : index
    %c0_4 = arith.constant 0 : index
    %5 = vector.load %arg2[%c0_3, %c0_4] : memref<16x32xf32, #tpu.memory_space<vmem>>, vector<16x32xf32>
    %cst = arith.constant dense<0.000000e+00> : vector<32x32xf32>
    %6 = tpu.matmul %4, %5, %cst {dimension_numbers = #tpu.dot_dimension_numbers<[1], [0], [0], [1], [0, 0, 1, 1], [], []>} : vector<32x16xf32>, vector<16x32xf32>, vector<32x32xf32> -> vector<32x32xf32>
    %c0_5 = arith.constant 0 : index
    %c0_6 = arith.constant 0 : index
    %7 = vector.load %arg4[%c0_5, %c0_6] : memref<1x32xf32, #tpu.memory_space<vmem>>, vector<1x32xf32>
    %8 = vector.broadcast %7 : vector<1x32xf32> to vector<32x32xf32>
    %9 = arith.addf %6, %8 : vector<32x32xf32>
    %10 = vector.shape_cast %9 : vector<32x32xf32> to vector<4x8x32xf32>
    %c0_7 = arith.constant 0 : index
    %c0_8 = arith.constant 0 : index
    %11 = vector.load %arg3[%c0_7, %c0_8] : memref<32x32xf32, #tpu.memory_space<vmem>>, vector<32x32xf32>
    %c0_9 = arith.constant 0 : index
    %c0_10 = arith.constant 0 : index
    %12 = vector.load %arg9[%c0_9, %c0_10] : memref<4x32xf32, #tpu.memory_space<vmem>>, vector<4x32xf32>
    %13 = vector.extract_strided_slice %10 {offsets = [0, 0, 0], sizes = [4, 1, 32], strides = [1, 1, 1]} : vector<4x8x32xf32> to vector<4x1x32xf32>
    %14 = vector.shape_cast %13 : vector<4x1x32xf32> to vector<4x32xf32>
    %cst_11 = arith.constant dense<0.000000e+00> : vector<4x32xf32>
    %15 = tpu.matmul %12, %11, %cst_11 {dimension_numbers = #tpu.dot_dimension_numbers<[1], [0], [0], [1], [0, 0, 1, 1], [], []>} : vector<4x32xf32>, vector<32x32xf32>, vector<4x32xf32> -> vector<4x32xf32>
    %16 = arith.addf %14, %15 : vector<4x32xf32>
    %17 = math.tanh %16 : vector<4x32xf32>
    %c0_12 = arith.constant 0 : index
    %c0_13 = arith.constant 0 : index
    %c0_14 = arith.constant 0 : index
    %18 = vector.load %arg10[%c0_12, %c0_13, %c0_14] : memref<4x8x32xf32, #tpu.memory_space<vmem>>, vector<4x1x32xf32>
    %19 = vector.shape_cast %18 : vector<4x1x32xf32> to vector<4x32xf32>
    %20 = vector.shape_cast %17 : vector<4x32xf32> to vector<4x1x32xf32>
    tpu.vector_store %arg10[%c0_12, %c0_13, %c0_14], %20 {strides = array<i32>} : memref<4x8x32xf32, #tpu.memory_space<vmem>>, vector<4x1x32xf32>,
    %21 = vector.extract_strided_slice %10 {offsets = [0, 1, 0], sizes = [4, 1, 32], strides = [1, 1, 1]} : vector<4x8x32xf32> to vector<4x1x32xf32>
    %22 = vector.shape_cast %21 : vector<4x1x32xf32> to vector<4x32xf32>
    %cst_15 = arith.constant dense<0.000000e+00> : vector<4x32xf32>
    %23 = tpu.matmul %17, %11, %cst_15 {dimension_numbers = #tpu.dot_dimension_numbers<[1], [0], [0], [1], [0, 0, 1, 1], [], []>} : vector<4x32xf32>, vector<32x32xf32>, vector<4x32xf32> -> vector<4x32xf32>
    %24 = arith.addf %22, %23 : vector<4x32xf32>
    %25 = math.tanh %24 : vector<4x32xf32>
    %c0_16 = arith.constant 0 : index
    %c1 = arith.constant 1 : index
    %c0_17 = arith.constant 0 : index
    %26 = vector.load %arg10[%c0_16, %c1, %c0_17] : memref<4x8x32xf32, #tpu.memory_space<vmem>>, vector<4x1x32xf32>
    %27 = vector.shape_cast %26 : vector<4x1x32xf32> to vector<4x32xf32>
    %28 = vector.shape_cast %25 : vector<4x32xf32> to vector<4x1x32xf32>
    tpu.vector_store %arg10[%c0_16, %c1, %c0_17], %28 {strides = array<i32>} : memref<4x8x32xf32, #tpu.memory_space<vmem>>, vector<4x1x32xf32>,
    %29 = vector.extract_strided_slice %10 {offsets = [0, 2, 0], sizes = [4, 1, 32], strides = [1, 1, 1]} : vector<4x8x32xf32> to vector<4x1x32xf32>
    %30 = vector.shape_cast %29 : vector<4x1x32xf32> to vector<4x32xf32>
    %cst_18 = arith.constant dense<0.000000e+00> : vector<4x32xf32>
    %31 = tpu.matmul %25, %11, %cst_18 {dimension_numbers = #tpu.dot_dimension_numbers<[1], [0], [0], [1], [0, 0, 1, 1], [], []>} : vector<4x32xf32>, vector<32x32xf32>, vector<4x32xf32> -> vector<4x32xf32>
    %32 = arith.addf %30, %31 : vector<4x32xf32>
    %33 = math.tanh %32 : vector<4x32xf32>
    %c0_19 = arith.constant 0 : index
    %c2 = arith.constant 2 : index
    %c0_20 = arith.constant 0 : index
    %34 = vector.load %arg10[%c0_19, %c2, %c0_20] : memref<4x8x32xf32, #tpu.memory_space<vmem>>, vector<4x1x32xf32>
    %35 = vector.shape_cast %34 : vector<4x1x32xf32> to vector<4x32xf32>
    %36 = vector.shape_cast %33 : vector<4x32xf32> to vector<4x1x32xf32>
    tpu.vector_store %arg10[%c0_19, %c2, %c0_20], %36 {strides = array<i32>} : memref<4x8x32xf32, #tpu.memory_space<vmem>>, vector<4x1x32xf32>,
    %37 = vector.extract_strided_slice %10 {offsets = [0, 3, 0], sizes = [4, 1, 32], strides = [1, 1, 1]} : vector<4x8x32xf32> to vector<4x1x32xf32>
    %38 = vector.shape_cast %37 : vector<4x1x32xf32> to vector<4x32xf32>
    %cst_21 = arith.constant dense<0.000000e+00> : vector<4x32xf32>
    %39 = tpu.matmul %33, %11, %cst_21 {dimension_numbers = #tpu.dot_dimension_numbers<[1], [0], [0], [1], [0, 0, 1, 1], [], []>} : vector<4x32xf32>, vector<32x32xf32>, vector<4x32xf32> -> vector<4x32xf32>
    %40 = arith.addf %38, %39 : vector<4x32xf32>
    %41 = math.tanh %40 : vector<4x32xf32>
    %c0_22 = arith.constant 0 : index
    %c3 = arith.constant 3 : index
    %c0_23 = arith.constant 0 : index
    %42 = vector.load %arg10[%c0_22, %c3, %c0_23] : memref<4x8x32xf32, #tpu.memory_space<vmem>>, vector<4x1x32xf32>
    %43 = vector.shape_cast %42 : vector<4x1x32xf32> to vector<4x32xf32>
    %44 = vector.shape_cast %41 : vector<4x32xf32> to vector<4x1x32xf32>
    tpu.vector_store %arg10[%c0_22, %c3, %c0_23], %44 {strides = array<i32>} : memref<4x8x32xf32, #tpu.memory_space<vmem>>, vector<4x1x32xf32>,
    %45 = vector.extract_strided_slice %10 {offsets = [0, 4, 0], sizes = [4, 1, 32], strides = [1, 1, 1]} : vector<4x8x32xf32> to vector<4x1x32xf32>
    %46 = vector.shape_cast %45 : vector<4x1x32xf32> to vector<4x32xf32>
    %cst_24 = arith.constant dense<0.000000e+00> : vector<4x32xf32>
    %47 = tpu.matmul %41, %11, %cst_24 {dimension_numbers = #tpu.dot_dimension_numbers<[1], [0], [0], [1], [0, 0, 1, 1], [], []>} : vector<4x32xf32>, vector<32x32xf32>, vector<4x32xf32> -> vector<4x32xf32>
    %48 = arith.addf %46, %47 : vector<4x32xf32>
    %49 = math.tanh %48 : vector<4x32xf32>
    %c0_25 = arith.constant 0 : index
    %c4 = arith.constant 4 : index
    %c0_26 = arith.constant 0 : index
    %50 = vector.load %arg10[%c0_25, %c4, %c0_26] : memref<4x8x32xf32, #tpu.memory_space<vmem>>, vector<4x1x32xf32>
    %51 = vector.shape_cast %50 : vector<4x1x32xf32> to vector<4x32xf32>
    %52 = vector.shape_cast %49 : vector<4x32xf32> to vector<4x1x32xf32>
    tpu.vector_store %arg10[%c0_25, %c4, %c0_26], %52 {strides = array<i32>} : memref<4x8x32xf32, #tpu.memory_space<vmem>>, vector<4x1x32xf32>,
    %53 = vector.extract_strided_slice %10 {offsets = [0, 5, 0], sizes = [4, 1, 32], strides = [1, 1, 1]} : vector<4x8x32xf32> to vector<4x1x32xf32>
    %54 = vector.shape_cast %53 : vector<4x1x32xf32> to vector<4x32xf32>
    %cst_27 = arith.constant dense<0.000000e+00> : vector<4x32xf32>
    %55 = tpu.matmul %49, %11, %cst_27 {dimension_numbers = #tpu.dot_dimension_numbers<[1], [0], [0], [1], [0, 0, 1, 1], [], []>} : vector<4x32xf32>, vector<32x32xf32>, vector<4x32xf32> -> vector<4x32xf32>
    %56 = arith.addf %54, %55 : vector<4x32xf32>
    %57 = math.tanh %56 : vector<4x32xf32>
    %c0_28 = arith.constant 0 : index
    %c5 = arith.constant 5 : index
    %c0_29 = arith.constant 0 : index
    %58 = vector.load %arg10[%c0_28, %c5, %c0_29] : memref<4x8x32xf32, #tpu.memory_space<vmem>>, vector<4x1x32xf32>
    %59 = vector.shape_cast %58 : vector<4x1x32xf32> to vector<4x32xf32>
    %60 = vector.shape_cast %57 : vector<4x32xf32> to vector<4x1x32xf32>
    tpu.vector_store %arg10[%c0_28, %c5, %c0_29], %60 {strides = array<i32>} : memref<4x8x32xf32, #tpu.memory_space<vmem>>, vector<4x1x32xf32>,
    %61 = vector.extract_strided_slice %10 {offsets = [0, 6, 0], sizes = [4, 1, 32], strides = [1, 1, 1]} : vector<4x8x32xf32> to vector<4x1x32xf32>
    %62 = vector.shape_cast %61 : vector<4x1x32xf32> to vector<4x32xf32>
    %cst_30 = arith.constant dense<0.000000e+00> : vector<4x32xf32>
    %63 = tpu.matmul %57, %11, %cst_30 {dimension_numbers = #tpu.dot_dimension_numbers<[1], [0], [0], [1], [0, 0, 1, 1], [], []>} : vector<4x32xf32>, vector<32x32xf32>, vector<4x32xf32> -> vector<4x32xf32>
    %64 = arith.addf %62, %63 : vector<4x32xf32>
    %65 = math.tanh %64 : vector<4x32xf32>
    %c0_31 = arith.constant 0 : index
    %c6 = arith.constant 6 : index
    %c0_32 = arith.constant 0 : index
    %66 = vector.load %arg10[%c0_31, %c6, %c0_32] : memref<4x8x32xf32, #tpu.memory_space<vmem>>, vector<4x1x32xf32>
    %67 = vector.shape_cast %66 : vector<4x1x32xf32> to vector<4x32xf32>
    %68 = vector.shape_cast %65 : vector<4x32xf32> to vector<4x1x32xf32>
    tpu.vector_store %arg10[%c0_31, %c6, %c0_32], %68 {strides = array<i32>} : memref<4x8x32xf32, #tpu.memory_space<vmem>>, vector<4x1x32xf32>,
    %69 = vector.extract_strided_slice %10 {offsets = [0, 7, 0], sizes = [4, 1, 32], strides = [1, 1, 1]} : vector<4x8x32xf32> to vector<4x1x32xf32>
    %70 = vector.shape_cast %69 : vector<4x1x32xf32> to vector<4x32xf32>
    %cst_33 = arith.constant dense<0.000000e+00> : vector<4x32xf32>
    %71 = tpu.matmul %65, %11, %cst_33 {dimension_numbers = #tpu.dot_dimension_numbers<[1], [0], [0], [1], [0, 0, 1, 1], [], []>} : vector<4x32xf32>, vector<32x32xf32>, vector<4x32xf32> -> vector<4x32xf32>
    %72 = arith.addf %70, %71 : vector<4x32xf32>
    %73 = math.tanh %72 : vector<4x32xf32>
    %c0_34 = arith.constant 0 : index
    %c7 = arith.constant 7 : index
    %c0_35 = arith.constant 0 : index
    %74 = vector.load %arg10[%c0_34, %c7, %c0_35] : memref<4x8x32xf32, #tpu.memory_space<vmem>>, vector<4x1x32xf32>
    %75 = vector.shape_cast %74 : vector<4x1x32xf32> to vector<4x32xf32>
    %76 = vector.shape_cast %73 : vector<4x32xf32> to vector<4x1x32xf32>
    tpu.vector_store %arg10[%c0_34, %c7, %c0_35], %76 {strides = array<i32>} : memref<4x8x32xf32, #tpu.memory_space<vmem>>, vector<4x1x32xf32>,
    %c0_36 = arith.constant 0 : index
    %c0_37 = arith.constant 0 : index
    %77 = vector.load %arg9[%c0_36, %c0_37] : memref<4x32xf32, #tpu.memory_space<vmem>>, vector<4x32xf32>
    tpu.vector_store %arg9[%c0_36, %c0_37], %73 {strides = array<i32>} : memref<4x32xf32, #tpu.memory_space<vmem>>, vector<4x32xf32>,
    %c0_38 = arith.constant 0 : index
    %c0_39 = arith.constant 0 : index
    %c0_40 = arith.constant 0 : index
    %78 = vector.load %arg10[%c0_38, %c0_39, %c0_40] : memref<4x8x32xf32, #tpu.memory_space<vmem>>, vector<4x8x32xf32>
    %79 = vector.shape_cast %78 : vector<4x8x32xf32> to vector<32x32xf32>
    %c0_41 = arith.constant 0 : index
    %c0_42 = arith.constant 0 : index
    %80 = vector.load %arg5[%c0_41, %c0_42] : memref<32x8xf32, #tpu.memory_space<vmem>>, vector<32x8xf32>
    %cst_43 = arith.constant dense<0.000000e+00> : vector<32x8xf32>
    %81 = tpu.matmul %79, %80, %cst_43 {dimension_numbers = #tpu.dot_dimension_numbers<[1], [0], [0], [1], [0, 0, 1, 1], [], []>} : vector<32x32xf32>, vector<32x8xf32>, vector<32x8xf32> -> vector<32x8xf32>
    %c0_44 = arith.constant 0 : index
    %c0_45 = arith.constant 0 : index
    %82 = vector.load %arg6[%c0_44, %c0_45] : memref<1x8xf32, #tpu.memory_space<vmem>>, vector<1x8xf32>
    %83 = vector.broadcast %82 : vector<1x8xf32> to vector<32x8xf32>
    %84 = arith.addf %81, %83 : vector<32x8xf32>
    %85 = vector.shape_cast %84 : vector<32x8xf32> to vector<4x8x8xf32>
    %c0_46 = arith.constant 0 : index
    %c0_47 = arith.constant 0 : index
    %c0_48 = arith.constant 0 : index
    %86 = vector.load %arg8[%c0_46, %c0_47, %c0_48] : memref<4x8x8xf32, #tpu.memory_space<vmem>>, vector<4x8x8xf32>
    tpu.vector_store %arg8[%c0_46, %c0_47, %c0_48], %85 {strides = array<i32>} : memref<4x8x8xf32, #tpu.memory_space<vmem>>, vector<4x8x8xf32>,
    %c2_i32 = arith.constant 2 : i32
    %87 = arith.cmpi eq, %arg0, %c2_i32 : i32
    %88 = arith.extui %87 : i1 to i32
    %c0_i32_49 = arith.constant 0 : i32
    %89 = arith.cmpi ne, %88, %c0_i32_49 : i32
    scf.if %89 {
      %c0_50 = arith.constant 0 : index
      %c0_51 = arith.constant 0 : index
      %90 = vector.load %arg7[%c0_50, %c0_51] : memref<4x32xf32, #tpu.memory_space<vmem>>, vector<4x32xf32>
      tpu.vector_store %arg7[%c0_50, %c0_51], %73 {strides = array<i32>} : memref<4x32xf32, #tpu.memory_space<vmem>>, vector<4x32xf32>,
    } else {
    }
    return
  }
  func.func @transform_0(%arg0: i32) -> (i32, i32, i32) {
    %c0_i32 = arith.constant 0 : i32
    %c0_i32_0 = arith.constant 0 : i32
    %c0_i32_1 = arith.constant 0 : i32
    return %c0_i32, %arg0, %c0_i32_0 : i32, i32, i32
  }
  func.func @transform_1(%arg0: i32) -> (i32, i32) {
    %c0_i32 = arith.constant 0 : i32
    %c0_i32_0 = arith.constant 0 : i32
    %c0_i32_1 = arith.constant 0 : i32
    return %c0_i32, %c0_i32_0 : i32, i32
  }
  func.func @transform_2(%arg0: i32) -> (i32, i32) {
    %c0_i32 = arith.constant 0 : i32
    %c0_i32_0 = arith.constant 0 : i32
    %c0_i32_1 = arith.constant 0 : i32
    return %c0_i32, %c0_i32_0 : i32, i32
  }
  func.func @transform_3(%arg0: i32) -> (i32, i32) {
    %c0_i32 = arith.constant 0 : i32
    %c0_i32_0 = arith.constant 0 : i32
    %c0_i32_1 = arith.constant 0 : i32
    return %c0_i32, %c0_i32_0 : i32, i32
  }
  func.func @transform_4(%arg0: i32) -> (i32, i32) {
    %c0_i32 = arith.constant 0 : i32
    %c0_i32_0 = arith.constant 0 : i32
    %c0_i32_1 = arith.constant 0 : i32
    return %c0_i32, %c0_i32_0 : i32, i32
  }
  func.func @transform_5(%arg0: i32) -> (i32, i32) {
    %c0_i32 = arith.constant 0 : i32
    %c0_i32_0 = arith.constant 0 : i32
    %c0_i32_1 = arith.constant 0 : i32
    return %c0_i32, %c0_i32_0 : i32, i32
  }
  func.func @transform_6(%arg0: i32) -> (i32, i32) {
    %c0_i32 = arith.constant 0 : i32
    %c0_i32_0 = arith.constant 0 : i32
    %c0_i32_1 = arith.constant 0 : i32
    return %c0_i32, %c0_i32_0 : i32, i32
  }
  func.func @transform_7(%arg0: i32) -> (i32, i32, i32) {
    %c0_i32 = arith.constant 0 : i32
    %c0_i32_0 = arith.constant 0 : i32
    %c0_i32_1 = arith.constant 0 : i32
    return %c0_i32, %arg0, %c0_i32_0 : i32, i32, i32
  }
}

</mosaic_0001>

<llo_original>
// kernel: tpu_custom_call.1
$region0: #{tpu_custom_call.1}
  #allocation0 [shape = 'u32[]', space=smem, size = 0x4, offset = 0x4, fixed_abs, tag = 'smem constant byte address 0x4 - core index']
  #allocation1 [shape = 'u32[144,128]{1,0:T(1,128)}', space=vmem, size = 0x12000, scoped, tag = 'internal scratch']
  #allocation2 [shape = 'f32[4,32]{1,0:T(4,128)}', space=vmem, size = 0x800, scoped, tag = 'scratch operand']
  #allocation3 [shape = 'f32[4,8,32]{2,1,0:T(8,128)}', space=vmem, size = 0x4000, scoped, tag = 'scratch operand']
  %s0 = inlined_call_operand.vmem [shape: f32[4,24,16], index: 0, kind: input, shape index: {}]
  %s1 = inlined_call_operand.vmem [shape: f32[16,32], index: 1, kind: input, shape index: {}]
  %s2 = inlined_call_operand.vmem [shape: f32[32,32], index: 2, kind: input, shape index: {}]
  %s3 = inlined_call_operand.vmem [shape: f32[1,32], index: 3, kind: input, shape index: {}]
  %s4 = inlined_call_operand.vmem [shape: f32[32,8], index: 4, kind: input, shape index: {}]
  %s5 = inlined_call_operand.vmem [shape: f32[1,8], index: 5, kind: input, shape index: {}]
  %s6 = inlined_call_operand.hbm [shape: f32[4,32], index: 6, kind: output, shape index: {0}]
  %s7 = inlined_call_operand.vmem [shape: f32[4,24,8], index: 7, kind: output, shape index: {1}]
  %8 = xla_tuple %s6, %s7
  %s9 = sld [smem:[#allocation0]]
  $region145: #{tpu_custom_call.1} parent=0
    _
  %s11 = ssub.s32 1, %s9
  %s12 = scalar_select 0, %s11, %s9
  $region1: #{tpu_custom_call.1} parent=0
    #allocation4 [shape = 'u8[32768]{0}', space=vmem, size = 0x8000, scoped, tag = 'input window, operand 0']
    #allocation5 [shape = 'u8[2048]{0}', space=vmem, size = 0x800, scoped, tag = 'output window, operand 0, single buffered']
    #allocation6 [shape = 's32[2]{0}', space=sflag, size = 0x8, scoped, tag = 'scoped memory for tpu_custom_call.1']
    #allocation7 [shape = 'u8[32768]{0}', space=vmem, size = 0x8000, scoped, tag = 'output window, operand 1']
    %13 = vsyncpa [#allocation6], 0
    loop: start=0, step=1, limit=5
    $region2: #{tpu_custom_call.1} parent=1 // loop_pre_header
      _
    $region3: #{tpu_custom_call.1} parent=1 // loop_header
      %s15 = sphi 0, %s19
      %p16 = scmp.ge.s32.totalorder %s15, 5
      %s25 = sphi 0, %s27
      %s28 = sphi 0, %s25
      %s29 = sphi 0, %s28
      %s45 = sphi 0, %s29
      %s49 = sphi 0, %s49
      %s51 = sphi 0, %s49
      %s52 = sphi 0, %s51
      %s66 = sphi 0, %s52
      %s70 = sphi 0, %s70
      %s72 = sphi 0, %s70
      %s73 = sphi 0, %s72
      %s87 = sphi 0, %s73
      %s91 = sphi 0, %s91
      %s93 = sphi 0, %s91
      %s94 = sphi 0, %s93
      %s108 = sphi 0, %s94
      %s112 = sphi 0, %s112
      %s114 = sphi 0, %s112
      %s115 = sphi 0, %s114
      %s129 = sphi 0, %s115
      %s133 = sphi 0, %s133
      %s135 = sphi 0, %s133
      %s136 = sphi 0, %s135
      %s150 = sphi 0, %s136
      %s154 = sphi 0, %s154
      %s156 = sphi 0, %s154
      %s157 = sphi 0, %s156
      %s171 = sphi 0, %s157
      %s177 = sphi 0, %s179
      %s180 = sphi 0, %s177
      %s181 = sphi 0, %s180
      %s197 = sphi 0, %s181
    $region4: #{tpu_custom_call.1} parent=1 // loop_header_branch
      %18 = sbr.rel (%p16) target = $region8
    $region5: #{tpu_custom_call.1} parent=1 // loop_body
      %s20 = ssub.s32 %s15, 1
      %s21 = ssub.s32 %s15, 2
      %s22 = sadd.s32 %s15, 1
      %s23 = ssub.s32 %s15, %s22
      %p24 = scmp.eq.s32.totalorder %s23, 0
      %s26 = sadd.s32 %s25, 1
      %s27 = scalar_select %p24, %s25, %s26
      %p30 = pneg %p24
      %p31 = scmp.eq.s32.totalorder %s15, 2
      %p32 = por %p30, %p31
      %p33 = scmp.ne.s32.totalorder %s25, %s28
      %p34 = scmp.eq.s32.totalorder %s15, 0
      %p35 = por %p33, %p34
      %p36 = scmp.ne.s32.totalorder %s25, %s28
      %p37 = scmp.eq.s32.totalorder %s20, 2
      %p38 = por %p36, %p37
      %p39 = scmp.ne.s32.totalorder %s28, %s29
      %p40 = scmp.eq.s32.totalorder %s20, 0
      %p41 = por %p39, %p40
      %p42 = scmp.ne.s32.totalorder %s28, %s29
      %p43 = scmp.eq.s32.totalorder %s21, 2
      %p44 = por %p42, %p43
      %p46 = scmp.ne.s32.totalorder %s29, %s45
      %p47 = scmp.eq.s32.totalorder %s21, 0
      %p48 = por %p46, %p47
      %s50 = sadd.s32 %s49, 1
      %p53 = scmp.eq.s32.totalorder %s15, 2
      %p54 = scmp.ne.s32.totalorder %s49, %s51
      %p55 = scmp.eq.s32.totalorder %s15, 0
      %p56 = por %p54, %p55
      %p57 = scmp.ne.s32.totalorder %s49, %s51
      %p58 = scmp.eq.s32.totalorder %s20, 2
      %p59 = por %p57, %p58
      %p60 = scmp.ne.s32.totalorder %s51, %s52
      %p61 = scmp.eq.s32.totalorder %s20, 0
      %p62 = por %p60, %p61
      %p63 = scmp.ne.s32.totalorder %s51, %s52
      %p64 = scmp.eq.s32.totalorder %s21, 2
      %p65 = por %p63, %p64
      %p67 = scmp.ne.s32.totalorder %s52, %s66
      %p68 = scmp.eq.s32.totalorder %s21, 0
      %p69 = por %p67, %p68
      %s71 = sadd.s32 %s70, 1
      %p74 = scmp.eq.s32.totalorder %s15, 2
      %p75 = scmp.ne.s32.totalorder %s70, %s72
      %p76 = scmp.eq.s32.totalorder %s15, 0
      %p77 = por %p75, %p76
      %p78 = scmp.ne.s32.totalorder %s70, %s72
      %p79 = scmp.eq.s32.totalorder %s20, 2
      %p80 = por %p78, %p79
      %p81 = scmp.ne.s32.totalorder %s72, %s73
      %p82 = scmp.eq.s32.totalorder %s20, 0
      %p83 = por %p81, %p82
      %p84 = scmp.ne.s32.totalorder %s72, %s73
      %p85 = scmp.eq.s32.totalorder %s21, 2
      %p86 = por %p84, %p85
      %p88 = scmp.ne.s32.totalorder %s73, %s87
      %p89 = scmp.eq.s32.totalorder %s21, 0
      %p90 = por %p88, %p89
      %s92 = sadd.s32 %s91, 1
      %p95 = scmp.eq.s32.totalorder %s15, 2
      %p96 = scmp.ne.s32.totalorder %s91, %s93
      %p97 = scmp.eq.s32.totalorder %s15, 0
      %p98 = por %p96, %p97
      %p99 = scmp.ne.s32.totalorder %s91, %s93
      %p100 = scmp.eq.s32.totalorder %s20, 2
      %p101 = por %p99, %p100
      %p102 = scmp.ne.s32.totalorder %s93, %s94
      %p103 = scmp.eq.s32.totalorder %s20, 0
      %p104 = por %p102, %p103
      %p105 = scmp.ne.s32.totalorder %s93, %s94
      %p106 = scmp.eq.s32.totalorder %s21, 2
      %p107 = por %p105, %p106
      %p109 = scmp.ne.s32.totalorder %s94, %s108
      %p110 = scmp.eq.s32.totalorder %s21, 0
      %p111 = por %p109, %p110
      %s113 = sadd.s32 %s112, 1
      %p116 = scmp.eq.s32.totalorder %s15, 2
      %p117 = scmp.ne.s32.totalorder %s112, %s114
      %p118 = scmp.eq.s32.totalorder %s15, 0
      %p119 = por %p117, %p118
      %p120 = scmp.ne.s32.totalorder %s112, %s114
      %p121 = scmp.eq.s32.totalorder %s20, 2
      %p122 = por %p120, %p121
      %p123 = scmp.ne.s32.totalorder %s114, %s115
      %p124 = scmp.eq.s32.totalorder %s20, 0
      %p125 = por %p123, %p124
      %p126 = scmp.ne.s32.totalorder %s114, %s115
      %p127 = scmp.eq.s32.totalorder %s21, 2
      %p128 = por %p126, %p127
      %p130 = scmp.ne.s32.totalorder %s115, %s129
      %p131 = scmp.eq.s32.totalorder %s21, 0
      %p132 = por %p130, %p131
      %s134 = sadd.s32 %s133, 1
      %p137 = scmp.eq.s32.totalorder %s15, 2
      %p138 = scmp.ne.s32.totalorder %s133, %s135
      %p139 = scmp.eq.s32.totalorder %s15, 0
      %p140 = por %p138, %p139
      %p141 = scmp.ne.s32.totalorder %s133, %s135
      %p142 = scmp.eq.s32.totalorder %s20, 2
      %p143 = por %p141, %p142
      %p144 = scmp.ne.s32.totalorder %s135, %s136
      %p145 = scmp.eq.s32.totalorder %s20, 0
      %p146 = por %p144, %p145
      %p147 = scmp.ne.s32.totalorder %s135, %s136
      %p148 = scmp.eq.s32.totalorder %s21, 2
      %p149 = por %p147, %p148
      %p151 = scmp.ne.s32.totalorder %s136, %s150
      %p152 = scmp.eq.s32.totalorder %s21, 0
      %p153 = por %p151, %p152
      %s155 = sadd.s32 %s154, 1
      %p158 = scmp.eq.s32.totalorder %s15, 2
      %p159 = scmp.ne.s32.totalorder %s154, %s156
      %p160 = scmp.eq.s32.totalorder %s15, 0
      %p161 = por %p159, %p160
      %p162 = scmp.ne.s32.totalorder %s154, %s156
      %p163 = scmp.eq.s32.totalorder %s20, 2
      %p164 = por %p162, %p163
      %p165 = scmp.ne.s32.totalorder %s156, %s157
      %p166 = scmp.eq.s32.totalorder %s20, 0
      %p167 = por %p165, %p166
      %p168 = scmp.ne.s32.totalorder %s156, %s157
      %p169 = scmp.eq.s32.totalorder %s21, 2
      %p170 = por %p168, %p169
      %p172 = scmp.ne.s32.totalorder %s157, %s171
      %p173 = scmp.eq.s32.totalorder %s21, 0
      %p174 = por %p172, %p173
      %s175 = ssub.s32 %s15, %s22
      %p176 = scmp.eq.s32.totalorder %s175, 0
      %s178 = sadd.s32 %s177, 1
      %s179 = scalar_select %p176, %s177, %s178
      %p182 = pneg %p176
      %p183 = scmp.eq.s32.totalorder %s15, 2
      %p184 = por %p182, %p183
      %p185 = scmp.ne.s32.totalorder %s177, %s180
      %p186 = scmp.eq.s32.totalorder %s15, 0
      %p187 = por %p185, %p186
      %p188 = scmp.ne.s32.totalorder %s177, %s180
      %p189 = scmp.eq.s32.totalorder %s20, 2
      %p190 = por %p188, %p189
      %p191 = scmp.ne.s32.totalorder %s180, %s181
      %p192 = scmp.eq.s32.totalorder %s20, 0
      %p193 = por %p191, %p192
      %p194 = scmp.ne.s32.totalorder %s180, %s181
      %p195 = scmp.eq.s32.totalorder %s21, 2
      %p196 = por %p194, %p195
      %p198 = scmp.ne.s32.totalorder %s181, %s197
      %p199 = scmp.eq.s32.totalorder %s21, 0
      %p200 = por %p198, %p199
      %p201 = scmp.le.s32.totalorder 1, %s15
      %p202 = scmp.lt.s32.totalorder %s15, 4
      %p203 = pnand %p201, %p202
      %p204 = pneg %p203
      // Predicated region
      $region9: #{tpu_custom_call.1} parent=5 // pred_check
        _
      $region10: #{tpu_custom_call.1} parent=5 // pred_check_branch
        %206 = sbr.rel (%p203) target = $region12
      $region11: #{tpu_custom_call.1} parent=5 // pred_region
        %s207 = ssub.s32 %s15, 1
        // Predicated region
        $region13: #{tpu_custom_call.1} parent=11 // pred_check
          %p208 = pneg %p62
        $region14: #{tpu_custom_call.1} parent=11 // pred_check_branch
          %210 = sbr.rel (%p208) target = $region16
        $region15: #{tpu_custom_call.1} parent=11 // pred_region
          _
        $region16: #{tpu_custom_call.1} parent=11 // pred_fallthru
          _
        // Predicated region
        $region17: #{tpu_custom_call.1} parent=11 // pred_check
          %p211 = pneg %p83
        $region18: #{tpu_custom_call.1} parent=11 // pred_check_branch
          %213 = sbr.rel (%p211) target = $region20
        $region19: #{tpu_custom_call.1} parent=11 // pred_region
          _
        $region20: #{tpu_custom_call.1} parent=11 // pred_fallthru
          _
        // Predicated region
        $region21: #{tpu_custom_call.1} parent=11 // pred_check
          %p214 = pneg %p104
        $region22: #{tpu_custom_call.1} parent=11 // pred_check_branch
          %216 = sbr.rel (%p214) target = $region24
        $region23: #{tpu_custom_call.1} parent=11 // pred_region
          _
        $region24: #{tpu_custom_call.1} parent=11 // pred_fallthru
          _
        // Predicated region
        $region25: #{tpu_custom_call.1} parent=11 // pred_check
          %p217 = pneg %p125
        $region26: #{tpu_custom_call.1} parent=11 // pred_check_branch
          %219 = sbr.rel (%p217) target = $region28
        $region27: #{tpu_custom_call.1} parent=11 // pred_region
          _
        $region28: #{tpu_custom_call.1} parent=11 // pred_fallthru
          _
        // Predicated region
        $region29: #{tpu_custom_call.1} parent=11 // pred_check
          %p220 = pneg %p146
        $region30: #{tpu_custom_call.1} parent=11 // pred_check_branch
          %222 = sbr.rel (%p220) target = $region32
        $region31: #{tpu_custom_call.1} parent=11 // pred_region
          _
        $region32: #{tpu_custom_call.1} parent=11 // pred_fallthru
          _
      $region12: #{tpu_custom_call.1} parent=5 // pred_fallthru
        _
      %p223 = scmp.lt.s32.totalorder %s15, 3
      // Predicated region
      $region33: #{tpu_custom_call.1} parent=5 // pred_check
        %p224 = pneg %p223
      $region34: #{tpu_custom_call.1} parent=5 // pred_check_branch
        %226 = sbr.rel (%p224) target = $region36
      $region35: #{tpu_custom_call.1} parent=5 // pred_region
        // Predicated region
        $region37: #{tpu_custom_call.1} parent=35 // pred_check
          %p227 = pneg %p35
        $region38: #{tpu_custom_call.1} parent=35 // pred_check_branch
          %229 = sbr.rel (%p227) target = $region40
        $region39: #{tpu_custom_call.1} parent=35 // pred_region
          %s230 = sand.u32 %s25, 1
          %s231 = sand.u32 %s25, 1
          %s232 = smul.addr %s231, 32
          %s233 = scalar_lea.vmem [#allocation4], %s232
          %s234 = smul.addr %s15, 8
          %s235 = scalar_lea.vmem %s0, %s234
          // Predicated region
          $region41: #{tpu_custom_call.1} parent=39 // pred_check
            _
          $region42: #{tpu_custom_call.1} parent=39 // pred_check_branch
            %237 = sbr.rel (0) target = $region44
          $region43: #{tpu_custom_call.1} parent=39 // pred_region
            // Predicated region
            $region45: #{tpu_custom_call.1} parent=43 // pred_check
              _
            $region46: #{tpu_custom_call.1} parent=43 // pred_check_branch
              %239 = sbr.rel (0) target = $region48
            $region47: #{tpu_custom_call.1} parent=43 // pred_region
              // Predicated region
              $region60: #{tpu_custom_call.1} parent=47 // pred_check
                _
              $region61: #{tpu_custom_call.1} parent=47 // pred_check_branch
                %261 = sbr.rel (0) target = $region63
              $region62: #{tpu_custom_call.1} parent=47 // pred_region
                loop: start=0, step=1, limit=1
                $region64: #{tpu_custom_call.1} parent=62 // loop_pre_header
                  _
                $region65: #{tpu_custom_call.1} parent=62 // loop_header
                  %s263 = sphi 0, %s267
                  %p264 = scmp.ge.s32.totalorder %s263, 1
                  %s268 = sphi %s235, %s235
                  %s269 = sphi %s233, %s233
                $region66: #{tpu_custom_call.1} parent=62 // loop_header_branch
                  %266 = sbr.rel (%p264) target = $region70
                $region67: #{tpu_custom_call.1} parent=62 // loop_body
                  %v270 = vld [vmem:[%s268] sm:$0xff]
                  %271 = vst [vmem:[%s269] sm:$0xff] %v270
                  %v272 = vld [vmem:[%s268 + $0x18] sm:$0xff]
                  %273 = vst [vmem:[%s269 + $0x8] sm:$0xff] %v272
                  %v274 = vld [vmem:[%s268 + $0x30] sm:$0xff]
                  %275 = vst [vmem:[%s269 + $0x10] sm:$0xff] %v274
                  %v276 = vld [vmem:[%s268 + $0x48] sm:$0xff]
                  %277 = vst [vmem:[%s269 + $0x18] sm:$0xff] %v276
                $region68: #{tpu_custom_call.1} parent=62 // loop_footer
                  %s267 = sadd.s32 1, %s263
                $region69: #{tpu_custom_call.1} parent=62 // loop_footer_branch
                  %262 = sbr.rel target = $region65
                $region70: #{tpu_custom_call.1} parent=62 // loop_exit
                  _
              $region63: #{tpu_custom_call.1} parent=47 // pred_fallthru
                _
              // Predicated region
              $region71: #{tpu_custom_call.1} parent=47 // pred_check
                _
              $region72: #{tpu_custom_call.1} parent=47 // pred_check_branch
                %279 = sbr.rel target = $region74
              $region73: #{tpu_custom_call.1} parent=47 // pred_region
                _
              $region74: #{tpu_custom_call.1} parent=47 // pred_fallthru
                _
            $region48: #{tpu_custom_call.1} parent=43 // pred_fallthru
              _
            // Predicated region
            $region49: #{tpu_custom_call.1} parent=43 // pred_check
              _
            $region50: #{tpu_custom_call.1} parent=43 // pred_check_branch
              %241 = sbr.rel target = $region52
            $region51: #{tpu_custom_call.1} parent=43 // pred_region
              %s243 = ssub.s32 256, 1
              loop: start=0, step=1, limit=1
              $region53: #{tpu_custom_call.1} parent=51 // loop_pre_header
                _
              $region54: #{tpu_custom_call.1} parent=51 // loop_header
                %s245 = sphi 0, %s249
                %p246 = scmp.ge.s32.totalorder %s245, 1
                %s250 = sphi %s235, %s235
                %s251 = sphi %s233, %s233
              $region55: #{tpu_custom_call.1} parent=51 // loop_header_branch
                %248 = sbr.rel (%p246) target = $region59
              $region56: #{tpu_custom_call.1} parent=51 // loop_body
                %v252 = vld [vmem:[%s250] sm:%s243]
                %253 = vst [vmem:[%s251] sm:%s243] %v252
                %v254 = vld [vmem:[%s250 + $0x18] sm:%s243]
                %255 = vst [vmem:[%s251 + $0x8] sm:%s243] %v254
                %v256 = vld [vmem:[%s250 + $0x30] sm:%s243]
                %257 = vst [vmem:[%s251 + $0x10] sm:%s243] %v256
                %v258 = vld [vmem:[%s250 + $0x48] sm:%s243]
                %259 = vst [vmem:[%s251 + $0x18] sm:%s243] %v258
              $region57: #{tpu_custom_call.1} parent=51 // loop_footer
                %s249 = sadd.s32 1, %s245
              $region58: #{tpu_custom_call.1} parent=51 // loop_footer_branch
                %244 = sbr.rel target = $region54
              $region59: #{tpu_custom_call.1} parent=51 // loop_exit
                _
            $region52: #{tpu_custom_call.1} parent=43 // pred_fallthru
              _
          $region44: #{tpu_custom_call.1} parent=39 // pred_fallthru
            _
          %280 = vnop
        $region40: #{tpu_custom_call.1} parent=35 // pred_fallthru
          _
      $region36: #{tpu_custom_call.1} parent=5 // pred_fallthru
        _
      %p281 = scmp.le.s32.totalorder 1, %s15
      %p282 = scmp.lt.s32.totalorder %s15, 4
      %p283 = pnand %p281, %p282
      %p284 = pneg %p283
      // Predicated region
      $region75: #{tpu_custom_call.1} parent=5 // pred_check
        _
      $region76: #{tpu_custom_call.1} parent=5 // pred_check_branch
        %286 = sbr.rel (%p283) target = $region78
      $region77: #{tpu_custom_call.1} parent=5 // pred_region
        %s287 = ssub.s32 %s15, 1
        %s288 = sand.u32 %s28, 1
        %s289 = sand.u32 %s28, 1
        %s290 = smul.addr %s289, 32
        %s291 = scalar_lea.vmem [#allocation4], %s290
        // Predicated region
        $region79: #{tpu_custom_call.1} parent=77 // pred_check
          %p292 = pneg %p41
        $region80: #{tpu_custom_call.1} parent=77 // pred_check_branch
          %294 = sbr.rel (%p292) target = $region82
        $region81: #{tpu_custom_call.1} parent=77 // pred_region
          _
        $region82: #{tpu_custom_call.1} parent=77 // pred_fallthru
          _
        %s295 = sand.u32 %s28, 1
        %s296 = sand.u32 %s28, 1
        %s297 = smul.addr %s296, 32
        %s298 = scalar_lea.vmem [#allocation4], %s297
        %p299 = pneg %p41
        %p300 = pneg %p38
        %p301 = pneg %p62
        %p302 = pneg %p59
        %p303 = pneg %p83
        %p304 = pneg %p80
        %p305 = pneg %p104
        %p306 = pneg %p101
        %p307 = pneg %p125
        %p308 = pneg %p122
        %p309 = pneg %p146
        %p310 = pneg %p143
        %p311 = pneg %p167
        %p312 = pneg %p164
        %p313 = pneg %p193
        %p314 = pneg %p190
        %s315 = sand.u32 %s180, 1
        %s316 = sand.u32 %s180, 1
        %s317 = smul.addr %s316, 32
        %s318 = scalar_lea.vmem [#allocation7], %s317
        %p319 = scmp.eq.s32.totalorder %s20, 0
        // Predicated region
        $region83: #{tpu_custom_call.1} parent=77 // pred_check
          %p320 = pneg %p319
        $region84: #{tpu_custom_call.1} parent=77 // pred_check_branch
          %322 = sbr.rel (%p320) target = $region86
        $region85: #{tpu_custom_call.1} parent=77 // pred_region
          %vm323 = vcmask 257024
          %324 = vst.msk [vmem:[#allocation2] sm:$0xf] %vm323, 0.0
        $region86: #{tpu_custom_call.1} parent=77 // pred_fallthru
          _
        %v325 = vld [vmem:[%s291] sm:$0xff]
        %v326 = vld [vmem:[%s291 + $0x8] sm:$0xff]
        %v327 = vld [vmem:[%s291 + $0x10] sm:$0xff]
        %v328 = vld [vmem:[%s291 + $0x18] sm:$0xff]
        %v329 = vld [vmem:[%s1] sm:$0xff]
        %v330 = vld [vmem:[%s1 + $0x8] sm:$0xff]
        %v331 = vld [vmem:[%s3] sm:$0x1]
        %v333 = vlaneseq
        %v334 = vshrl.u32 %v333, 7
        %v335 = vsub.s32 0, %v334
        %v336 = vrot.slane %v331, %v335
        %vm338 = vcmask 130048
        %v340 = vsel %vm338, %v325, 0
        %v343 = vsel %vm338, %v326, 0
        %v346 = vsel %vm338, %v327, 0
        %v349 = vsel %vm338, %v328, 0
        %351 = vmatprep.subr.mxu0 0.0
        %352 = vmatpush1.msra.mxu0 0.0
        %353 = vmatprep.subr.mxu0 0.0
        %354 = vmatpush1.msra.mxu0 0.0
        %355 = vmatprep.subr.mxu0 0.0
        %356 = vmatpush1.msra.mxu0 0.0
        %357 = vmatprep.subr.mxu0 0.0
        %358 = vmatpush1.msra.mxu0 0.0
        %359 = vmatprep.subr.mxu0 0.0
        %360 = vmatpush1.msra.mxu0 0.0
        %361 = vmatprep.subr.mxu0 0.0
        %362 = vmatpush1.msra.mxu0 0.0
        %363 = vmatprep.subr.mxu0 0.0
        %364 = vmatpush1.msra.mxu0 0.0
        %365 = vmatprep.subr.mxu0 0.0
        %366 = vmatpush1.msra.mxu0 0.0
        %367 = vmatprep.subr.mxu0 0.0
        %368 = vmatpush1.msra.mxu0 0.0
        %369 = vmatprep.subr.mxu0 0.0
        %370 = vmatpush1.msra.mxu0 0.0
        %371 = vmatprep.subr.mxu0 0.0
        %372 = vmatpush1.msra.mxu0 0.0
        %373 = vmatprep.subr.mxu0 0.0
        %374 = vmatpush1.msra.mxu0 0.0
        %375 = vmatprep.subr.mxu0 0.0
        %376 = vmatpush1.msra.mxu0 0.0
        %377 = vmatprep.subr.mxu0 0.0
        %378 = vmatpush1.msra.mxu0 0.0
        %379 = vmatprep.subr.mxu0 0.0
        %380 = vmatpush1.msra.mxu0 %v330
        %381 = vmatprep.subr.mxu0 0.0
        %382 = vmatpush1.msra.mxu0 %v329
        %383 = vmatprep.subr.mxu0 0.0
        %384 = vmatpush2.msra.mxu0 0.0
        %385 = vmatprep.subr.mxu0 0.0
        %386 = vmatpush2.msra.mxu0 0.0
        %387 = vmatprep.subr.mxu0 0.0
        %388 = vmatpush2.msra.mxu0 0.0
        %389 = vmatprep.subr.mxu0 0.0
        %390 = vmatpush2.msra.mxu0 0.0
        %391 = vmatprep.subr.mxu0 0.0
        %392 = vmatpush2.msra.mxu0 0.0
        %393 = vmatprep.subr.mxu0 0.0
        %394 = vmatpush2.msra.mxu0 0.0
        %395 = vmatprep.subr.mxu0 0.0
        %396 = vmatpush2.msra.mxu0 0.0
        %397 = vmatprep.subr.mxu0 0.0
        %398 = vmatpush2.msra.mxu0 0.0
        %399 = vmatprep.subr.mxu0 0.0
        %400 = vmatpush2.msra.mxu0 0.0
        %401 = vmatprep.subr.mxu0 0.0
        %402 = vmatpush2.msra.mxu0 0.0
        %403 = vmatprep.subr.mxu0 0.0
        %404 = vmatpush2.msra.mxu0 0.0
        %405 = vmatprep.subr.mxu0 0.0
        %406 = vmatpush2.msra.mxu0 0.0
        %407 = vmatprep.subr.mxu0 0.0
        %408 = vmatpush2.msra.mxu0 0.0
        %409 = vmatprep.subr.mxu0 0.0
        %410 = vmatpush2.msra.mxu0 0.0
        %411 = vmatprep.subr.mxu0 0.0
        %412 = vmatpush2.msra.mxu0 0.0
        %413 = vmatprep.subr.mxu0 0.0
        %414 = vmatpush2.msra.mxu0 0.0
        %415 = vmatprep.mubr.f32.mxu0 0.0
        %416 = vmatmul.mubr.f32.gmra.mxu0 %v340
        %v417 = vpop.f32.mrf.mxu0
        %v418 = vadd.f32 %v336, %v417
        %v419 = vpop.f32.mrf.mxu0
        %420 = vmatprep.mubr.f32.mxu0 0.0
        %421 = vmatmul.mubr.f32.gmra.mxu0 %v343
        %v422 = vpop.f32.mrf.mxu0
        %v423 = vadd.f32 %v336, %v422
        %v424 = vpop.f32.mrf.mxu0
        %425 = vmatprep.mubr.f32.mxu0 0.0
        %426 = vmatmul.mubr.f32.gmra.mxu0 %v346
        %v427 = vpop.f32.mrf.mxu0
        %v428 = vadd.f32 %v336, %v427
        %v429 = vpop.f32.mrf.mxu0
        %430 = vmatprep.mubr.f32.mxu0 0.0
        %431 = vmatmul.mubr.f32.gmra.mxu0 %v349
        %v432 = vpop.f32.mrf.mxu0
        %v433 = vadd.f32 %v336, %v432
        %v434 = vpop.f32.mrf.mxu0
        %435 = vdwg.mxu0
        %v436 = vld [vmem:[%s2] sm:$0xff]
        %v437 = vld [vmem:[%s2 + $0x8] sm:$0xff]
        %v438 = vld [vmem:[%s2 + $0x10] sm:$0xff]
        %v439 = vld [vmem:[%s2 + $0x18] sm:$0xff]
        %v440 = vld [vmem:[#allocation2] sm:$0xf]
        %vm441 = vcmask 261120
        %v443 = vsel %vm441, %v440, 0
        %445 = vmatprep.subr.mxu0 0.0
        %446 = vmatpush1.msra.mxu0 0.0
        %447 = vmatprep.subr.mxu0 0.0
        %448 = vmatpush1.msra.mxu0 0.0
        %449 = vmatprep.subr.mxu0 0.0
        %450 = vmatpush1.msra.mxu0 0.0
        %451 = vmatprep.subr.mxu0 0.0
        %452 = vmatpush1.msra.mxu0 0.0
        %453 = vmatprep.subr.mxu0 0.0
        %454 = vmatpush1.msra.mxu0 0.0
        %455 = vmatprep.subr.mxu0 0.0
        %456 = vmatpush1.msra.mxu0 0.0
        %457 = vmatprep.subr.mxu0 0.0
        %458 = vmatpush1.msra.mxu0 0.0
        %459 = vmatprep.subr.mxu0 0.0
        %460 = vmatpush1.msra.mxu0 0.0
        %461 = vmatprep.subr.mxu0 0.0
        %462 = vmatpush1.msra.mxu0 0.0
        %463 = vmatprep.subr.mxu0 0.0
        %464 = vmatpush1.msra.mxu0 0.0
        %465 = vmatprep.subr.mxu0 0.0
        %466 = vmatpush1.msra.mxu0 0.0
        %467 = vmatprep.subr.mxu0 0.0
        %468 = vmatpush1.msra.mxu0 0.0
        %469 = vmatprep.subr.mxu0 0.0
        %470 = vmatpush1.msra.mxu0 %v439
        %471 = vmatprep.subr.mxu0 0.0
        %472 = vmatpush1.msra.mxu0 %v438
        %473 = vmatprep.subr.mxu0 0.0
        %474 = vmatpush1.msra.mxu0 %v437
        %475 = vmatprep.subr.mxu0 0.0
        %476 = vmatpush1.msra.mxu0 %v436
        %477 = vmatprep.subr.mxu0 0.0
        %478 = vmatpush2.msra.mxu0 0.0
        %479 = vmatprep.subr.mxu0 0.0
        %480 = vmatpush2.msra.mxu0 0.0
        %481 = vmatprep.subr.mxu0 0.0
        %482 = vmatpush2.msra.mxu0 0.0
        %483 = vmatprep.subr.mxu0 0.0
        %484 = vmatpush2.msra.mxu0 0.0
        %485 = vmatprep.subr.mxu0 0.0
        %486 = vmatpush2.msra.mxu0 0.0
        %487 = vmatprep.subr.mxu0 0.0
        %488 = vmatpush2.msra.mxu0 0.0
        %489 = vmatprep.subr.mxu0 0.0
        %490 = vmatpush2.msra.mxu0 0.0
        %491 = vmatprep.subr.mxu0 0.0
        %492 = vmatpush2.msra.mxu0 0.0
        %493 = vmatprep.subr.mxu0 0.0
        %494 = vmatpush2.msra.mxu0 0.0
        %495 = vmatprep.subr.mxu0 0.0
        %496 = vmatpush2.msra.mxu0 0.0
        %497 = vmatprep.subr.mxu0 0.0
        %498 = vmatpush2.msra.mxu0 0.0
        %499 = vmatprep.subr.mxu0 0.0
        %500 = vmatpush2.msra.mxu0 0.0
        %501 = vmatprep.subr.mxu0 0.0
        %502 = vmatpush2.msra.mxu0 0.0
        %503 = vmatprep.subr.mxu0 0.0
        %504 = vmatpush2.msra.mxu0 0.0
        %505 = vmatprep.subr.mxu0 0.0
        %506 = vmatpush2.msra.mxu0 0.0
        %507 = vmatprep.subr.mxu0 0.0
        %508 = vmatpush2.msra.mxu0 0.0
        %509 = vmatprep.mubr.f32.mxu0 0.0
        %510 = vmatmul.mubr.f32.gmra.mxu0 %v443
        %v511 = vpop.f32.mrf.mxu0
        %v512 = vadd.f32 0.0, %v511
        %v513 = vpop.f32.mrf.mxu0
        %514 = vdwg.mxu0
        %v516 = vrot.slane %v512, 1
        %v517 = vrot.slane %v512, 2
        %v518 = vrot.slane %v512, 3
        %v523 = vadd.f32 %v418, %v512
        %v524 = vadd.f32 %v423, %v516
        %v525 = vadd.f32 %v428, %v517
        %v526 = vadd.f32 %v433, %v518
        %v527 = vtanh.pop %v523
        %v528 = vtanh.pop %v524
        %v529 = vtanh.pop %v525
        %v530 = vtanh.pop %v526
        %vm531 = vcmask 253952
        %532 = vst.msk [vmem:[#allocation3] sm:$0x1] %vm531, %v527
        %533 = vst.msk [vmem:[#allocation3 + $0x8] sm:$0x1] %vm531, %v528
        %534 = vst.msk [vmem:[#allocation3 + $0x10] sm:$0x1] %vm531, %v529
        %535 = vst.msk [vmem:[#allocation3 + $0x18] sm:$0x1] %vm531, %v530
        %v540 = vrot.slane %v528, 7
        %vm541 = vcmask 1041409
        %v542 = vsel %vm541, %v540, %v527
        %v543 = vrot.slane %v529, 6
        %vm544 = vcmask 1042434
        %v545 = vsel %vm544, %v543, %v542
        %v546 = vrot.slane %v530, 5
        %vm547 = vcmask 1043459
        %v548 = vsel %vm547, %v546, %v545
        %v549 = vsel %vm441, %v548, 0
        %551 = vmatprep.subr.mxu0 0.0
        %552 = vmatpush1.msra.mxu0 0.0
        %553 = vmatprep.subr.mxu0 0.0
        %554 = vmatpush1.msra.mxu0 0.0
        %555 = vmatprep.subr.mxu0 0.0
        %556 = vmatpush1.msra.mxu0 0.0
        %557 = vmatprep.subr.mxu0 0.0
        %558 = vmatpush1.msra.mxu0 0.0
        %559 = vmatprep.subr.mxu0 0.0
        %560 = vmatpush1.msra.mxu0 0.0
        %561 = vmatprep.subr.mxu0 0.0
        %562 = vmatpush1.msra.mxu0 0.0
        %563 = vmatprep.subr.mxu0 0.0
        %564 = vmatpush1.msra.mxu0 0.0
        %565 = vmatprep.subr.mxu0 0.0
        %566 = vmatpush1.msra.mxu0 0.0
        %567 = vmatprep.subr.mxu0 0.0
        %568 = vmatpush1.msra.mxu0 0.0
        %569 = vmatprep.subr.mxu0 0.0
        %570 = vmatpush1.msra.mxu0 0.0
        %571 = vmatprep.subr.mxu0 0.0
        %572 = vmatpush1.msra.mxu0 0.0
        %573 = vmatprep.subr.mxu0 0.0
        %574 = vmatpush1.msra.mxu0 0.0
        %575 = vmatprep.subr.mxu0 0.0
        %576 = vmatpush1.msra.mxu0 %v439
        %577 = vmatprep.subr.mxu0 0.0
        %578 = vmatpush1.msra.mxu0 %v438
        %579 = vmatprep.subr.mxu0 0.0
        %580 = vmatpush1.msra.mxu0 %v437
        %581 = vmatprep.subr.mxu0 0.0
        %582 = vmatpush1.msra.mxu0 %v436
        %583 = vmatprep.subr.mxu0 0.0
        %584 = vmatpush2.msra.mxu0 0.0
        %585 = vmatprep.subr.mxu0 0.0
        %586 = vmatpush2.msra.mxu0 0.0
        %587 = vmatprep.subr.mxu0 0.0
        %588 = vmatpush2.msra.mxu0 0.0
        %589 = vmatprep.subr.mxu0 0.0
        %590 = vmatpush2.msra.mxu0 0.0
        %591 = vmatprep.subr.mxu0 0.0
        %592 = vmatpush2.msra.mxu0 0.0
        %593 = vmatprep.subr.mxu0 0.0
        %594 = vmatpush2.msra.mxu0 0.0
        %595 = vmatprep.subr.mxu0 0.0
        %596 = vmatpush2.msra.mxu0 0.0
        %597 = vmatprep.subr.mxu0 0.0
        %598 = vmatpush2.msra.mxu0 0.0
        %599 = vmatprep.subr.mxu0 0.0
        %600 = vmatpush2.msra.mxu0 0.0
        %601 = vmatprep.subr.mxu0 0.0
        %602 = vmatpush2.msra.mxu0 0.0
        %603 = vmatprep.subr.mxu0 0.0
        %604 = vmatpush2.msra.mxu0 0.0
        %605 = vmatprep.subr.mxu0 0.0
        %606 = vmatpush2.msra.mxu0 0.0
        %607 = vmatprep.subr.mxu0 0.0
        %608 = vmatpush2.msra.mxu0 0.0
        %609 = vmatprep.subr.mxu0 0.0
        %610 = vmatpush2.msra.mxu0 0.0
        %611 = vmatprep.subr.mxu0 0.0
        %612 = vmatpush2.msra.mxu0 0.0
        %613 = vmatprep.subr.mxu0 0.0
        %614 = vmatpush2.msra.mxu0 0.0
        %615 = vmatprep.mubr.f32.mxu0 0.0
        %616 = vmatmul.mubr.f32.gmra.mxu0 %v549
        %v617 = vpop.f32.mrf.mxu0
        %v618 = vadd.f32 0.0, %v617
        %v619 = vpop.f32.mrf.mxu0
        %620 = vdwg.mxu0
        %v622 = vrot.slane %v618, 7
        %v623 = vrot.slane %v618, 1
        %v624 = vrot.slane %v618, 2
        %v629 = vadd.f32 %v418, %v622
        %v630 = vadd.f32 %v423, %v618
        %v631 = vadd.f32 %v428, %v623
        %v632 = vadd.f32 %v433, %v624
        %v633 = vtanh.pop %v629
        %v634 = vtanh.pop %v630
        %v635 = vtanh.pop %v631
        %v636 = vtanh.pop %v632
        %vm637 = vcmask 254977
        %638 = vst.msk [vmem:[#allocation3] sm:$0x2] %vm637, %v633
        %639 = vst.msk [vmem:[#allocation3 + $0x8] sm:$0x2] %vm637, %v634
        %640 = vst.msk [vmem:[#allocation3 + $0x10] sm:$0x2] %vm637, %v635
        %641 = vst.msk [vmem:[#allocation3 + $0x18] sm:$0x2] %vm637, %v636
        %v646 = vrot.slane %v633, 1
        %v647 = vsel %vm541, %v634, %v646
        %v648 = vrot.slane %v635, 7
        %v649 = vsel %vm544, %v648, %v647
        %v650 = vrot.slane %v636, 6
        %v651 = vsel %vm547, %v650, %v649
        %v652 = vsel %vm441, %v651, 0
        %654 = vmatprep.subr.mxu0 0.0
        %655 = vmatpush1.msra.mxu0 0.0
        %656 = vmatprep.subr.mxu0 0.0
        %657 = vmatpush1.msra.mxu0 0.0
        %658 = vmatprep.subr.mxu0 0.0
        %659 = vmatpush1.msra.mxu0 0.0
        %660 = vmatprep.subr.mxu0 0.0
        %661 = vmatpush1.msra.mxu0 0.0
        %662 = vmatprep.subr.mxu0 0.0
        %663 = vmatpush1.msra.mxu0 0.0
        %664 = vmatprep.subr.mxu0 0.0
        %665 = vmatpush1.msra.mxu0 0.0
        %666 = vmatprep.subr.mxu0 0.0
        %667 = vmatpush1.msra.mxu0 0.0
        %668 = vmatprep.subr.mxu0 0.0
        %669 = vmatpush1.msra.mxu0 0.0
        %670 = vmatprep.subr.mxu0 0.0
        %671 = vmatpush1.msra.mxu0 0.0
        %672 = vmatprep.subr.mxu0 0.0
        %673 = vmatpush1.msra.mxu0 0.0
        %674 = vmatprep.subr.mxu0 0.0
        %675 = vmatpush1.msra.mxu0 0.0
        %676 = vmatprep.subr.mxu0 0.0
        %677 = vmatpush1.msra.mxu0 0.0
        %678 = vmatprep.subr.mxu0 0.0
        %679 = vmatpush1.msra.mxu0 %v439
        %680 = vmatprep.subr.mxu0 0.0
        %681 = vmatpush1.msra.mxu0 %v438
        %682 = vmatprep.subr.mxu0 0.0
        %683 = vmatpush1.msra.mxu0 %v437
        %684 = vmatprep.subr.mxu0 0.0
        %685 = vmatpush1.msra.mxu0 %v436
        %686 = vmatprep.subr.mxu0 0.0
        %687 = vmatpush2.msra.mxu0 0.0
        %688 = vmatprep.subr.mxu0 0.0
        %689 = vmatpush2.msra.mxu0 0.0
        %690 = vmatprep.subr.mxu0 0.0
        %691 = vmatpush2.msra.mxu0 0.0
        %692 = vmatprep.subr.mxu0 0.0
        %693 = vmatpush2.msra.mxu0 0.0
        %694 = vmatprep.subr.mxu0 0.0
        %695 = vmatpush2.msra.mxu0 0.0
        %696 = vmatprep.subr.mxu0 0.0
        %697 = vmatpush2.msra.mxu0 0.0
        %698 = vmatprep.subr.mxu0 0.0
        %699 = vmatpush2.msra.mxu0 0.0
        %700 = vmatprep.subr.mxu0 0.0
        %701 = vmatpush2.msra.mxu0 0.0
        %702 = vmatprep.subr.mxu0 0.0
        %703 = vmatpush2.msra.mxu0 0.0
        %704 = vmatprep.subr.mxu0 0.0
        %705 = vmatpush2.msra.mxu0 0.0
        %706 = vmatprep.subr.mxu0 0.0
        %707 = vmatpush2.msra.mxu0 0.0
        %708 = vmatprep.subr.mxu0 0.0
        %709 = vmatpush2.msra.mxu0 0.0
        %710 = vmatprep.subr.mxu0 0.0
        %711 = vmatpush2.msra.mxu0 0.0
        %712 = vmatprep.subr.mxu0 0.0
        %713 = vmatpush2.msra.mxu0 0.0
        %714 = vmatprep.subr.mxu0 0.0
        %715 = vmatpush2.msra.mxu0 0.0
        %716 = vmatprep.subr.mxu0 0.0
        %717 = vmatpush2.msra.mxu0 0.0
        %718 = vmatprep.mubr.f32.mxu0 0.0
        %719 = vmatmul.mubr.f32.gmra.mxu0 %v652
        %v720 = vpop.f32.mrf.mxu0
        %v721 = vadd.f32 0.0, %v720
        %v722 = vpop.f32.mrf.mxu0
        %723 = vdwg.mxu0
        %v725 = vrot.slane %v721, 6
        %v726 = vrot.slane %v721, 7
        %v727 = vrot.slane %v721, 1
        %v732 = vadd.f32 %v418, %v725
        %v733 = vadd.f32 %v423, %v726
        %v734 = vadd.f32 %v428, %v721
        %v735 = vadd.f32 %v433, %v727
        %v736 = vtanh.pop %v732
        %v737 = vtanh.pop %v733
        %v738 = vtanh.pop %v734
        %v739 = vtanh.pop %v735
        %vm740 = vcmask 256002
        %741 = vst.msk [vmem:[#allocation3] sm:$0x4] %vm740, %v736
        %742 = vst.msk [vmem:[#allocation3 + $0x8] sm:$0x4] %vm740, %v737
        %743 = vst.msk [vmem:[#allocation3 + $0x10] sm:$0x4] %vm740, %v738
        %744 = vst.msk [vmem:[#allocation3 + $0x18] sm:$0x4] %vm740, %v739
        %v749 = vrot.slane %v736, 2
        %v750 = vrot.slane %v737, 1
        %v751 = vsel %vm541, %v750, %v749
        %v752 = vsel %vm544, %v738, %v751
        %v753 = vrot.slane %v739, 7
        %v754 = vsel %vm547, %v753, %v752
        %v755 = vsel %vm441, %v754, 0
        %757 = vmatprep.subr.mxu0 0.0
        %758 = vmatpush1.msra.mxu0 0.0
        %759 = vmatprep.subr.mxu0 0.0
        %760 = vmatpush1.msra.mxu0 0.0
        %761 = vmatprep.subr.mxu0 0.0
        %762 = vmatpush1.msra.mxu0 0.0
        %763 = vmatprep.subr.mxu0 0.0
        %764 = vmatpush1.msra.mxu0 0.0
        %765 = vmatprep.subr.mxu0 0.0
        %766 = vmatpush1.msra.mxu0 0.0
        %767 = vmatprep.subr.mxu0 0.0
        %768 = vmatpush1.msra.mxu0 0.0
        %769 = vmatprep.subr.mxu0 0.0
        %770 = vmatpush1.msra.mxu0 0.0
        %771 = vmatprep.subr.mxu0 0.0
        %772 = vmatpush1.msra.mxu0 0.0
        %773 = vmatprep.subr.mxu0 0.0
        %774 = vmatpush1.msra.mxu0 0.0
        %775 = vmatprep.subr.mxu0 0.0
        %776 = vmatpush1.msra.mxu0 0.0
        %777 = vmatprep.subr.mxu0 0.0
        %778 = vmatpush1.msra.mxu0 0.0
        %779 = vmatprep.subr.mxu0 0.0
        %780 = vmatpush1.msra.mxu0 0.0
        %781 = vmatprep.subr.mxu0 0.0
        %782 = vmatpush1.msra.mxu0 %v439
        %783 = vmatprep.subr.mxu0 0.0
        %784 = vmatpush1.msra.mxu0 %v438
        %785 = vmatprep.subr.mxu0 0.0
        %786 = vmatpush1.msra.mxu0 %v437
        %787 = vmatprep.subr.mxu0 0.0
        %788 = vmatpush1.msra.mxu0 %v436
        %789 = vmatprep.subr.mxu0 0.0
        %790 = vmatpush2.msra.mxu0 0.0
        %791 = vmatprep.subr.mxu0 0.0
        %792 = vmatpush2.msra.mxu0 0.0
        %793 = vmatprep.subr.mxu0 0.0
        %794 = vmatpush2.msra.mxu0 0.0
        %795 = vmatprep.subr.mxu0 0.0
        %796 = vmatpush2.msra.mxu0 0.0
        %797 = vmatprep.subr.mxu0 0.0
        %798 = vmatpush2.msra.mxu0 0.0
        %799 = vmatprep.subr.mxu0 0.0
        %800 = vmatpush2.msra.mxu0 0.0
        %801 = vmatprep.subr.mxu0 0.0
        %802 = vmatpush2.msra.mxu0 0.0
        %803 = vmatprep.subr.mxu0 0.0
        %804 = vmatpush2.msra.mxu0 0.0
        %805 = vmatprep.subr.mxu0 0.0
        %806 = vmatpush2.msra.mxu0 0.0
        %807 = vmatprep.subr.mxu0 0.0
        %808 = vmatpush2.msra.mxu0 0.0
        %809 = vmatprep.subr.mxu0 0.0
        %810 = vmatpush2.msra.mxu0 0.0
        %811 = vmatprep.subr.mxu0 0.0
        %812 = vmatpush2.msra.mxu0 0.0
        %813 = vmatprep.subr.mxu0 0.0
        %814 = vmatpush2.msra.mxu0 0.0
        %815 = vmatprep.subr.mxu0 0.0
        %816 = vmatpush2.msra.mxu0 0.0
        %817 = vmatprep.subr.mxu0 0.0
        %818 = vmatpush2.msra.mxu0 0.0
        %819 = vmatprep.subr.mxu0 0.0
        %820 = vmatpush2.msra.mxu0 0.0
        %821 = vmatprep.mubr.f32.mxu0 0.0
        %822 = vmatmul.mubr.f32.gmra.mxu0 %v755
        %v823 = vpop.f32.mrf.mxu0
        %v824 = vadd.f32 0.0, %v823
        %v825 = vpop.f32.mrf.mxu0
        %826 = vdwg.mxu0
        %v828 = vrot.slane %v824, 5
        %v829 = vrot.slane %v824, 6
        %v830 = vrot.slane %v824, 7
        %v835 = vadd.f32 %v418, %v828
        %v836 = vadd.f32 %v423, %v829
        %v837 = vadd.f32 %v428, %v830
        %v838 = vadd.f32 %v433, %v824
        %v839 = vtanh.pop %v835
        %v840 = vtanh.pop %v836
        %v841 = vtanh.pop %v837
        %v842 = vtanh.pop %v838
        %vm843 = vcmask 257027
        %844 = vst.msk [vmem:[#allocation3] sm:$0x8] %vm843, %v839
        %845 = vst.msk [vmem:[#allocation3 + $0x8] sm:$0x8] %vm843, %v840
        %846 = vst.msk [vmem:[#allocation3 + $0x10] sm:$0x8] %vm843, %v841
        %847 = vst.msk [vmem:[#allocation3 + $0x18] sm:$0x8] %vm843, %v842
        %v852 = vrot.slane %v839, 3
        %v853 = vrot.slane %v840, 2
        %v854 = vsel %vm541, %v853, %v852
        %v855 = vrot.slane %v841, 1
        %v856 = vsel %vm544, %v855, %v854
        %v857 = vsel %vm547, %v842, %v856
        %v858 = vsel %vm441, %v857, 0
        %860 = vmatprep.subr.mxu0 0.0
        %861 = vmatpush1.msra.mxu0 0.0
        %862 = vmatprep.subr.mxu0 0.0
        %863 = vmatpush1.msra.mxu0 0.0
        %864 = vmatprep.subr.mxu0 0.0
        %865 = vmatpush1.msra.mxu0 0.0
        %866 = vmatprep.subr.mxu0 0.0
        %867 = vmatpush1.msra.mxu0 0.0
        %868 = vmatprep.subr.mxu0 0.0
        %869 = vmatpush1.msra.mxu0 0.0
        %870 = vmatprep.subr.mxu0 0.0
        %871 = vmatpush1.msra.mxu0 0.0
        %872 = vmatprep.subr.mxu0 0.0
        %873 = vmatpush1.msra.mxu0 0.0
        %874 = vmatprep.subr.mxu0 0.0
        %875 = vmatpush1.msra.mxu0 0.0
        %876 = vmatprep.subr.mxu0 0.0
        %877 = vmatpush1.msra.mxu0 0.0
        %878 = vmatprep.subr.mxu0 0.0
        %879 = vmatpush1.msra.mxu0 0.0
        %880 = vmatprep.subr.mxu0 0.0
        %881 = vmatpush1.msra.mxu0 0.0
        %882 = vmatprep.subr.mxu0 0.0
        %883 = vmatpush1.msra.mxu0 0.0
        %884 = vmatprep.subr.mxu0 0.0
        %885 = vmatpush1.msra.mxu0 %v439
        %886 = vmatprep.subr.mxu0 0.0
        %887 = vmatpush1.msra.mxu0 %v438
        %888 = vmatprep.subr.mxu0 0.0
        %889 = vmatpush1.msra.mxu0 %v437
        %890 = vmatprep.subr.mxu0 0.0
        %891 = vmatpush1.msra.mxu0 %v436
        %892 = vmatprep.subr.mxu0 0.0
        %893 = vmatpush2.msra.mxu0 0.0
        %894 = vmatprep.subr.mxu0 0.0
        %895 = vmatpush2.msra.mxu0 0.0
        %896 = vmatprep.subr.mxu0 0.0
        %897 = vmatpush2.msra.mxu0 0.0
        %898 = vmatprep.subr.mxu0 0.0
        %899 = vmatpush2.msra.mxu0 0.0
        %900 = vmatprep.subr.mxu0 0.0
        %901 = vmatpush2.msra.mxu0 0.0
        %902 = vmatprep.subr.mxu0 0.0
        %903 = vmatpush2.msra.mxu0 0.0
        %904 = vmatprep.subr.mxu0 0.0
        %905 = vmatpush2.msra.mxu0 0.0
        %906 = vmatprep.subr.mxu0 0.0
        %907 = vmatpush2.msra.mxu0 0.0
        %908 = vmatprep.subr.mxu0 0.0
        %909 = vmatpush2.msra.mxu0 0.0
        %910 = vmatprep.subr.mxu0 0.0
        %911 = vmatpush2.msra.mxu0 0.0
        %912 = vmatprep.subr.mxu0 0.0
        %913 = vmatpush2.msra.mxu0 0.0
        %914 = vmatprep.subr.mxu0 0.0
        %915 = vmatpush2.msra.mxu0 0.0
        %916 = vmatprep.subr.mxu0 0.0
        %917 = vmatpush2.msra.mxu0 0.0
        %918 = vmatprep.subr.mxu0 0.0
        %919 = vmatpush2.msra.mxu0 0.0
        %920 = vmatprep.subr.mxu0 0.0
        %921 = vmatpush2.msra.mxu0 0.0
        %922 = vmatprep.subr.mxu0 0.0
        %923 = vmatpush2.msra.mxu0 0.0
        %924 = vmatprep.mubr.f32.mxu0 0.0
        %925 = vmatmul.mubr.f32.gmra.mxu0 %v858
        %v926 = vpop.f32.mrf.mxu0
        %v927 = vadd.f32 0.0, %v926
        %v928 = vpop.f32.mrf.mxu0
        %929 = vdwg.mxu0
        %v931 = vrot.slane %v927, 4
        %v932 = vrot.slane %v927, 5
        %v933 = vrot.slane %v927, 6
        %v934 = vrot.slane %v927, 7
        %v939 = vadd.f32 %v418, %v931
        %v940 = vadd.f32 %v423, %v932
        %v941 = vadd.f32 %v428, %v933
        %v942 = vadd.f32 %v433, %v934
        %v943 = vtanh.pop %v939
        %v944 = vtanh.pop %v940
        %v945 = vtanh.pop %v941
        %v946 = vtanh.pop %v942
        %vm947 = vcmask 258052
        %948 = vst.msk [vmem:[#allocation3] sm:$0x10] %vm947, %v943
        %949 = vst.msk [vmem:[#allocation3 + $0x8] sm:$0x10] %vm947, %v944
        %950 = vst.msk [vmem:[#allocation3 + $0x10] sm:$0x10] %vm947, %v945
        %951 = vst.msk [vmem:[#allocation3 + $0x18] sm:$0x10] %vm947, %v946
        %v956 = vrot.slane %v943, 4
        %v957 = vrot.slane %v944, 3
        %v958 = vsel %vm541, %v957, %v956
        %v959 = vrot.slane %v945, 2
        %v960 = vsel %vm544, %v959, %v958
        %v961 = vrot.slane %v946, 1
        %v962 = vsel %vm547, %v961, %v960
        %v963 = vsel %vm441, %v962, 0
        %965 = vmatprep.subr.mxu0 0.0
        %966 = vmatpush1.msra.mxu0 0.0
        %967 = vmatprep.subr.mxu0 0.0
        %968 = vmatpush1.msra.mxu0 0.0
        %969 = vmatprep.subr.mxu0 0.0
        %970 = vmatpush1.msra.mxu0 0.0
        %971 = vmatprep.subr.mxu0 0.0
        %972 = vmatpush1.msra.mxu0 0.0
        %973 = vmatprep.subr.mxu0 0.0
        %974 = vmatpush1.msra.mxu0 0.0
        %975 = vmatprep.subr.mxu0 0.0
        %976 = vmatpush1.msra.mxu0 0.0
        %977 = vmatprep.subr.mxu0 0.0
        %978 = vmatpush1.msra.mxu0 0.0
        %979 = vmatprep.subr.mxu0 0.0
        %980 = vmatpush1.msra.mxu0 0.0
        %981 = vmatprep.subr.mxu0 0.0
        %982 = vmatpush1.msra.mxu0 0.0
        %983 = vmatprep.subr.mxu0 0.0
        %984 = vmatpush1.msra.mxu0 0.0
        %985 = vmatprep.subr.mxu0 0.0
        %986 = vmatpush1.msra.mxu0 0.0
        %987 = vmatprep.subr.mxu0 0.0
        %988 = vmatpush1.msra.mxu0 0.0
        %989 = vmatprep.subr.mxu0 0.0
        %990 = vmatpush1.msra.mxu0 %v439
        %991 = vmatprep.subr.mxu0 0.0
        %992 = vmatpush1.msra.mxu0 %v438
        %993 = vmatprep.subr.mxu0 0.0
        %994 = vmatpush1.msra.mxu0 %v437
        %995 = vmatprep.subr.mxu0 0.0
        %996 = vmatpush1.msra.mxu0 %v436
        %997 = vmatprep.subr.mxu0 0.0
        %998 = vmatpush2.msra.mxu0 0.0
        %999 = vmatprep.subr.mxu0 0.0
        %1000 = vmatpush2.msra.mxu0 0.0
        %1001 = vmatprep.subr.mxu0 0.0
        %1002 = vmatpush2.msra.mxu0 0.0
        %1003 = vmatprep.subr.mxu0 0.0
        %1004 = vmatpush2.msra.mxu0 0.0
        %1005 = vmatprep.subr.mxu0 0.0
        %1006 = vmatpush2.msra.mxu0 0.0
        %1007 = vmatprep.subr.mxu0 0.0
        %1008 = vmatpush2.msra.mxu0 0.0
        %1009 = vmatprep.subr.mxu0 0.0
        %1010 = vmatpush2.msra.mxu0 0.0
        %1011 = vmatprep.subr.mxu0 0.0
        %1012 = vmatpush2.msra.mxu0 0.0
        %1013 = vmatprep.subr.mxu0 0.0
        %1014 = vmatpush2.msra.mxu0 0.0
        %1015 = vmatprep.subr.mxu0 0.0
        %1016 = vmatpush2.msra.mxu0 0.0
        %1017 = vmatprep.subr.mxu0 0.0
        %1018 = vmatpush2.msra.mxu0 0.0
        %1019 = vmatprep.subr.mxu0 0.0
        %1020 = vmatpush2.msra.mxu0 0.0
        %1021 = vmatprep.subr.mxu0 0.0
        %1022 = vmatpush2.msra.mxu0 0.0
        %1023 = vmatprep.subr.mxu0 0.0
        %1024 = vmatpush2.msra.mxu0 0.0
        %1025 = vmatprep.subr.mxu0 0.0
        %1026 = vmatpush2.msra.mxu0 0.0
        %1027 = vmatprep.subr.mxu0 0.0
        %1028 = vmatpush2.msra.mxu0 0.0
        %1029 = vmatprep.mubr.f32.mxu0 0.0
        %1030 = vmatmul.mubr.f32.gmra.mxu0 %v963
        %v1031 = vpop.f32.mrf.mxu0
        %v1032 = vadd.f32 0.0, %v1031
        %v1033 = vpop.f32.mrf.mxu0
        %1034 = vdwg.mxu0
        %v1036 = vrot.slane %v1032, 3
        %v1037 = vrot.slane %v1032, 4
        %v1038 = vrot.slane %v1032, 5
        %v1039 = vrot.slane %v1032, 6
        %v1044 = vadd.f32 %v418, %v1036
        %v1045 = vadd.f32 %v423, %v1037
        %v1046 = vadd.f32 %v428, %v1038
        %v1047 = vadd.f32 %v433, %v1039
        %v1048 = vtanh.pop %v1044
        %v1049 = vtanh.pop %v1045
        %v1050 = vtanh.pop %v1046
        %v1051 = vtanh.pop %v1047
        %vm1052 = vcmask 259077
        %1053 = vst.msk [vmem:[#allocation3] sm:$0x20] %vm1052, %v1048
        %1054 = vst.msk [vmem:[#allocation3 + $0x8] sm:$0x20] %vm1052, %v1049
        %1055 = vst.msk [vmem:[#allocation3 + $0x10] sm:$0x20] %vm1052, %v1050
        %1056 = vst.msk [vmem:[#allocation3 + $0x18] sm:$0x20] %vm1052, %v1051
        %v1061 = vrot.slane %v1048, 5
        %v1062 = vrot.slane %v1049, 4
        %v1063 = vsel %vm541, %v1062, %v1061
        %v1064 = vrot.slane %v1050, 3
        %v1065 = vsel %vm544, %v1064, %v1063
        %v1066 = vrot.slane %v1051, 2
        %v1067 = vsel %vm547, %v1066, %v1065
        %v1068 = vsel %vm441, %v1067, 0
        %1070 = vmatprep.subr.mxu0 0.0
        %1071 = vmatpush1.msra.mxu0 0.0
        %1072 = vmatprep.subr.mxu0 0.0
        %1073 = vmatpush1.msra.mxu0 0.0
        %1074 = vmatprep.subr.mxu0 0.0
        %1075 = vmatpush1.msra.mxu0 0.0
        %1076 = vmatprep.subr.mxu0 0.0
        %1077 = vmatpush1.msra.mxu0 0.0
        %1078 = vmatprep.subr.mxu0 0.0
        %1079 = vmatpush1.msra.mxu0 0.0
        %1080 = vmatprep.subr.mxu0 0.0
        %1081 = vmatpush1.msra.mxu0 0.0
        %1082 = vmatprep.subr.mxu0 0.0
        %1083 = vmatpush1.msra.mxu0 0.0
        %1084 = vmatprep.subr.mxu0 0.0
        %1085 = vmatpush1.msra.mxu0 0.0
        %1086 = vmatprep.subr.mxu0 0.0
        %1087 = vmatpush1.msra.mxu0 0.0
        %1088 = vmatprep.subr.mxu0 0.0
        %1089 = vmatpush1.msra.mxu0 0.0
        %1090 = vmatprep.subr.mxu0 0.0
        %1091 = vmatpush1.msra.mxu0 0.0
        %1092 = vmatprep.subr.mxu0 0.0
        %1093 = vmatpush1.msra.mxu0 0.0
        %1094 = vmatprep.subr.mxu0 0.0
        %1095 = vmatpush1.msra.mxu0 %v439
        %1096 = vmatprep.subr.mxu0 0.0
        %1097 = vmatpush1.msra.mxu0 %v438
        %1098 = vmatprep.subr.mxu0 0.0
        %1099 = vmatpush1.msra.mxu0 %v437
        %1100 = vmatprep.subr.mxu0 0.0
        %1101 = vmatpush1.msra.mxu0 %v436
        %1102 = vmatprep.subr.mxu0 0.0
        %1103 = vmatpush2.msra.mxu0 0.0
        %1104 = vmatprep.subr.mxu0 0.0
        %1105 = vmatpush2.msra.mxu0 0.0
        %1106 = vmatprep.subr.mxu0 0.0
        %1107 = vmatpush2.msra.mxu0 0.0
        %1108 = vmatprep.subr.mxu0 0.0
        %1109 = vmatpush2.msra.mxu0 0.0
        %1110 = vmatprep.subr.mxu0 0.0
        %1111 = vmatpush2.msra.mxu0 0.0
        %1112 = vmatprep.subr.mxu0 0.0
        %1113 = vmatpush2.msra.mxu0 0.0
        %1114 = vmatprep.subr.mxu0 0.0
        %1115 = vmatpush2.msra.mxu0 0.0
        %1116 = vmatprep.subr.mxu0 0.0
        %1117 = vmatpush2.msra.mxu0 0.0
        %1118 = vmatprep.subr.mxu0 0.0
        %1119 = vmatpush2.msra.mxu0 0.0
        %1120 = vmatprep.subr.mxu0 0.0
        %1121 = vmatpush2.msra.mxu0 0.0
        %1122 = vmatprep.subr.mxu0 0.0
        %1123 = vmatpush2.msra.mxu0 0.0
        %1124 = vmatprep.subr.mxu0 0.0
        %1125 = vmatpush2.msra.mxu0 0.0
        %1126 = vmatprep.subr.mxu0 0.0
        %1127 = vmatpush2.msra.mxu0 0.0
        %1128 = vmatprep.subr.mxu0 0.0
        %1129 = vmatpush2.msra.mxu0 0.0
        %1130 = vmatprep.subr.mxu0 0.0
        %1131 = vmatpush2.msra.mxu0 0.0
        %1132 = vmatprep.subr.mxu0 0.0
        %1133 = vmatpush2.msra.mxu0 0.0
        %1134 = vmatprep.mubr.f32.mxu0 0.0
        %1135 = vmatmul.mubr.f32.gmra.mxu0 %v1068
        %v1136 = vpop.f32.mrf.mxu0
        %v1137 = vadd.f32 0.0, %v1136
        %v1138 = vpop.f32.mrf.mxu0
        %1139 = vdwg.mxu0
        %v1141 = vrot.slane %v1137, 2
        %v1142 = vrot.slane %v1137, 3
        %v1143 = vrot.slane %v1137, 4
        %v1144 = vrot.slane %v1137, 5
        %v1149 = vadd.f32 %v418, %v1141
        %v1150 = vadd.f32 %v423, %v1142
        %v1151 = vadd.f32 %v428, %v1143
        %v1152 = vadd.f32 %v433, %v1144
        %v1153 = vtanh.pop %v1149
        %v1154 = vtanh.pop %v1150
        %v1155 = vtanh.pop %v1151
        %v1156 = vtanh.pop %v1152
        %vm1157 = vcmask 260102
        %1158 = vst.msk [vmem:[#allocation3] sm:$0x40] %vm1157, %v1153
        %1159 = vst.msk [vmem:[#allocation3 + $0x8] sm:$0x40] %vm1157, %v1154
        %1160 = vst.msk [vmem:[#allocation3 + $0x10] sm:$0x40] %vm1157, %v1155
        %1161 = vst.msk [vmem:[#allocation3 + $0x18] sm:$0x40] %vm1157, %v1156
        %v1166 = vrot.slane %v1153, 6
        %v1167 = vrot.slane %v1154, 5
        %v1168 = vsel %vm541, %v1167, %v1166
        %v1169 = vrot.slane %v1155, 4
        %v1170 = vsel %vm544, %v1169, %v1168
        %v1171 = vrot.slane %v1156, 3
        %v1172 = vsel %vm547, %v1171, %v1170
        %v1173 = vsel %vm441, %v1172, 0
        %1175 = vmatprep.subr.mxu0 0.0
        %1176 = vmatpush1.msra.mxu0 0.0
        %1177 = vmatprep.subr.mxu0 0.0
        %1178 = vmatpush1.msra.mxu0 0.0
        %1179 = vmatprep.subr.mxu0 0.0
        %1180 = vmatpush1.msra.mxu0 0.0
        %1181 = vmatprep.subr.mxu0 0.0
        %1182 = vmatpush1.msra.mxu0 0.0
        %1183 = vmatprep.subr.mxu0 0.0
        %1184 = vmatpush1.msra.mxu0 0.0
        %1185 = vmatprep.subr.mxu0 0.0
        %1186 = vmatpush1.msra.mxu0 0.0
        %1187 = vmatprep.subr.mxu0 0.0
        %1188 = vmatpush1.msra.mxu0 0.0
        %1189 = vmatprep.subr.mxu0 0.0
        %1190 = vmatpush1.msra.mxu0 0.0
        %1191 = vmatprep.subr.mxu0 0.0
        %1192 = vmatpush1.msra.mxu0 0.0
        %1193 = vmatprep.subr.mxu0 0.0
        %1194 = vmatpush1.msra.mxu0 0.0
        %1195 = vmatprep.subr.mxu0 0.0
        %1196 = vmatpush1.msra.mxu0 0.0
        %1197 = vmatprep.subr.mxu0 0.0
        %1198 = vmatpush1.msra.mxu0 0.0
        %1199 = vmatprep.subr.mxu0 0.0
        %1200 = vmatpush1.msra.mxu0 %v439
        %1201 = vmatprep.subr.mxu0 0.0
        %1202 = vmatpush1.msra.mxu0 %v438
        %1203 = vmatprep.subr.mxu0 0.0
        %1204 = vmatpush1.msra.mxu0 %v437
        %1205 = vmatprep.subr.mxu0 0.0
        %1206 = vmatpush1.msra.mxu0 %v436
        %1207 = vmatprep.subr.mxu0 0.0
        %1208 = vmatpush2.msra.mxu0 0.0
        %1209 = vmatprep.subr.mxu0 0.0
        %1210 = vmatpush2.msra.mxu0 0.0
        %1211 = vmatprep.subr.mxu0 0.0
        %1212 = vmatpush2.msra.mxu0 0.0
        %1213 = vmatprep.subr.mxu0 0.0
        %1214 = vmatpush2.msra.mxu0 0.0
        %1215 = vmatprep.subr.mxu0 0.0
        %1216 = vmatpush2.msra.mxu0 0.0
        %1217 = vmatprep.subr.mxu0 0.0
        %1218 = vmatpush2.msra.mxu0 0.0
        %1219 = vmatprep.subr.mxu0 0.0
        %1220 = vmatpush2.msra.mxu0 0.0
        %1221 = vmatprep.subr.mxu0 0.0
        %1222 = vmatpush2.msra.mxu0 0.0
        %1223 = vmatprep.subr.mxu0 0.0
        %1224 = vmatpush2.msra.mxu0 0.0
        %1225 = vmatprep.subr.mxu0 0.0
        %1226 = vmatpush2.msra.mxu0 0.0
        %1227 = vmatprep.subr.mxu0 0.0
        %1228 = vmatpush2.msra.mxu0 0.0
        %1229 = vmatprep.subr.mxu0 0.0
        %1230 = vmatpush2.msra.mxu0 0.0
        %1231 = vmatprep.subr.mxu0 0.0
        %1232 = vmatpush2.msra.mxu0 0.0
        %1233 = vmatprep.subr.mxu0 0.0
        %1234 = vmatpush2.msra.mxu0 0.0
        %1235 = vmatprep.subr.mxu0 0.0
        %1236 = vmatpush2.msra.mxu0 0.0
        %1237 = vmatprep.subr.mxu0 0.0
        %1238 = vmatpush2.msra.mxu0 0.0
        %1239 = vmatprep.mubr.f32.mxu0 0.0
        %1240 = vmatmul.mubr.f32.gmra.mxu0 %v1173
        %v1241 = vpop.f32.mrf.mxu0
        %v1242 = vadd.f32 0.0, %v1241
        %v1243 = vpop.f32.mrf.mxu0
        %1244 = vdwg.mxu0
        %v1246 = vrot.slane %v1242, 1
        %v1247 = vrot.slane %v1242, 2
        %v1248 = vrot.slane %v1242, 3
        %v1249 = vrot.slane %v1242, 4
        %v1254 = vadd.f32 %v418, %v1246
        %v1255 = vadd.f32 %v423, %v1247
        %v1256 = vadd.f32 %v428, %v1248
        %v1257 = vadd.f32 %v433, %v1249
        %v1258 = vtanh.pop %v1254
        %v1259 = vtanh.pop %v1255
        %v1260 = vtanh.pop %v1256
        %v1261 = vtanh.pop %v1257
        %vm1262 = vcmask 261127
        %1263 = vst.msk [vmem:[#allocation3] sm:$0x80] %vm1262, %v1258
        %1264 = vst.msk [vmem:[#allocation3 + $0x8] sm:$0x80] %vm1262, %v1259
        %1265 = vst.msk [vmem:[#allocation3 + $0x10] sm:$0x80] %vm1262, %v1260
        %1266 = vst.msk [vmem:[#allocation3 + $0x18] sm:$0x80] %vm1262, %v1261
        %v1271 = vrot.slane %v1259, 7
        %v1272 = vrot.slane %v1260, 6
        %v1273 = vsel %vm541, %v1272, %v1271
        %v1274 = vrot.slane %v1261, 5
        %v1275 = vsel %vm544, %v1274, %v1273
        %1278 = vst.msk [vmem:[#allocation2 - $0x7] sm:$0x80] %vm1262, %v1258
        %vm1279 = vcmask 256000
        %1280 = vst.msk [vmem:[#allocation2 + $0x1] sm:$0x7] %vm1279, %v1275
        %v1281 = vld [vmem:[#allocation3] sm:$0xff]
        %v1282 = vld [vmem:[#allocation3 + $0x8] sm:$0xff]
        %v1283 = vld [vmem:[#allocation3 + $0x10] sm:$0xff]
        %v1284 = vld [vmem:[#allocation3 + $0x18] sm:$0xff]
        %v1285 = vld [vmem:[%s4] sm:$0xff]
        %v1286 = vld [vmem:[%s4 + $0x8] sm:$0xff]
        %v1287 = vld [vmem:[%s4 + $0x10] sm:$0xff]
        %v1288 = vld [vmem:[%s4 + $0x18] sm:$0xff]
        %v1289 = vld [vmem:[%s5] sm:$0x1]
        %v1291 = vlaneseq
        %v1292 = vshrl.u32 %v1291, 7
        %v1293 = vsub.s32 0, %v1292
        %v1294 = vrot.slane %v1289, %v1293
        %v1297 = vsel %vm441, %v1281, 0
        %v1300 = vsel %vm441, %v1282, 0
        %v1303 = vsel %vm441, %v1283, 0
        %v1306 = vsel %vm441, %v1284, 0
        %1308 = vmatprep.subr.mxu0 0.0
        %1309 = vmatpush1.msra.mxu0 0.0
        %1310 = vmatprep.subr.mxu0 0.0
        %1311 = vmatpush1.msra.mxu0 0.0
        %1312 = vmatprep.subr.mxu0 0.0
        %1313 = vmatpush1.msra.mxu0 0.0
        %1314 = vmatprep.subr.mxu0 0.0
        %1315 = vmatpush1.msra.mxu0 0.0
        %1316 = vmatprep.subr.mxu0 0.0
        %1317 = vmatpush1.msra.mxu0 0.0
        %1318 = vmatprep.subr.mxu0 0.0
        %1319 = vmatpush1.msra.mxu0 0.0
        %1320 = vmatprep.subr.mxu0 0.0
        %1321 = vmatpush1.msra.mxu0 0.0
        %1322 = vmatprep.subr.mxu0 0.0
        %1323 = vmatpush1.msra.mxu0 0.0
        %1324 = vmatprep.subr.mxu0 0.0
        %1325 = vmatpush1.msra.mxu0 0.0
        %1326 = vmatprep.subr.mxu0 0.0
        %1327 = vmatpush1.msra.mxu0 0.0
        %1328 = vmatprep.subr.mxu0 0.0
        %1329 = vmatpush1.msra.mxu0 0.0
        %1330 = vmatprep.subr.mxu0 0.0
        %1331 = vmatpush1.msra.mxu0 0.0
        %1332 = vmatprep.subr.mxu0 0.0
        %1333 = vmatpush1.msra.mxu0 %v1288
        %1334 = vmatprep.subr.mxu0 0.0
        %1335 = vmatpush1.msra.mxu0 %v1287
        %1336 = vmatprep.subr.mxu0 0.0
        %1337 = vmatpush1.msra.mxu0 %v1286
        %1338 = vmatprep.subr.mxu0 0.0
        %1339 = vmatpush1.msra.mxu0 %v1285
        %1340 = vmatprep.subr.mxu0 0.0
        %1341 = vmatpush2.msra.mxu0 0.0
        %1342 = vmatprep.subr.mxu0 0.0
        %1343 = vmatpush2.msra.mxu0 0.0
        %1344 = vmatprep.subr.mxu0 0.0
        %1345 = vmatpush2.msra.mxu0 0.0
        %1346 = vmatprep.subr.mxu0 0.0
        %1347 = vmatpush2.msra.mxu0 0.0
        %1348 = vmatprep.subr.mxu0 0.0
        %1349 = vmatpush2.msra.mxu0 0.0
        %1350 = vmatprep.subr.mxu0 0.0
        %1351 = vmatpush2.msra.mxu0 0.0
        %1352 = vmatprep.subr.mxu0 0.0
        %1353 = vmatpush2.msra.mxu0 0.0
        %1354 = vmatprep.subr.mxu0 0.0
        %1355 = vmatpush2.msra.mxu0 0.0
        %1356 = vmatprep.subr.mxu0 0.0
        %1357 = vmatpush2.msra.mxu0 0.0
        %1358 = vmatprep.subr.mxu0 0.0
        %1359 = vmatpush2.msra.mxu0 0.0
        %1360 = vmatprep.subr.mxu0 0.0
        %1361 = vmatpush2.msra.mxu0 0.0
        %1362 = vmatprep.subr.mxu0 0.0
        %1363 = vmatpush2.msra.mxu0 0.0
        %1364 = vmatprep.subr.mxu0 0.0
        %1365 = vmatpush2.msra.mxu0 0.0
        %1366 = vmatprep.subr.mxu0 0.0
        %1367 = vmatpush2.msra.mxu0 0.0
        %1368 = vmatprep.subr.mxu0 0.0
        %1369 = vmatpush2.msra.mxu0 0.0
        %1370 = vmatprep.subr.mxu0 0.0
        %1371 = vmatpush2.msra.mxu0 0.0
        %1372 = vmatprep.mubr.f32.mxu0 0.0
        %1373 = vmatmul.mubr.f32.gmra.mxu0 %v1297
        %v1374 = vpop.f32.mrf.mxu0
        %v1375 = vadd.f32 %v1294, %v1374
        %v1376 = vpop.f32.mrf.mxu0
        %1377 = vmatprep.mubr.f32.mxu0 0.0
        %1378 = vmatmul.mubr.f32.gmra.mxu0 %v1300
        %v1379 = vpop.f32.mrf.mxu0
        %v1380 = vadd.f32 %v1294, %v1379
        %v1381 = vpop.f32.mrf.mxu0
        %1382 = vmatprep.mubr.f32.mxu0 0.0
        %1383 = vmatmul.mubr.f32.gmra.mxu0 %v1303
        %v1384 = vpop.f32.mrf.mxu0
        %v1385 = vadd.f32 %v1294, %v1384
        %v1386 = vpop.f32.mrf.mxu0
        %1387 = vmatprep.mubr.f32.mxu0 0.0
        %1388 = vmatmul.mubr.f32.gmra.mxu0 %v1306
        %v1389 = vpop.f32.mrf.mxu0
        %v1390 = vadd.f32 %v1294, %v1389
        %v1391 = vpop.f32.mrf.mxu0
        %1392 = vdwg.mxu0
        %vm1393 = vcmask 64512
        %1394 = vst.msk [vmem:[%s318] sm:$0xff] %vm1393, %v1375
        %1395 = vst.msk [vmem:[%s318 + $0x8] sm:$0xff] %vm1393, %v1380
        %1396 = vst.msk [vmem:[%s318 + $0x10] sm:$0xff] %vm1393, %v1385
        %1397 = vst.msk [vmem:[%s318 + $0x18] sm:$0xff] %vm1393, %v1390
        %p1398 = scmp.eq.s32.totalorder %s20, 2
        // Predicated region
        $region87: #{tpu_custom_call.1} parent=77 // pred_check
          %p1399 = pneg %p1398
        $region88: #{tpu_custom_call.1} parent=77 // pred_check_branch
          %1401 = sbr.rel (%p1399) target = $region90
        $region89: #{tpu_custom_call.1} parent=77 // pred_region
          %1402 = vst.msk [vmem:[#allocation5 - $0x7] sm:$0x80] %vm1262, %v1258
          %1403 = vst.msk [vmem:[#allocation5 + $0x1] sm:$0x7] %vm1279, %v1275
        $region90: #{tpu_custom_call.1} parent=77 // pred_fallthru
          _
        %s1404 = sand.u32 %s180, 1
        %s1405 = sand.u32 %s180, 1
        %s1406 = smul.addr %s1405, 32
        %s1407 = scalar_lea.vmem [#allocation7], %s1406
        // Predicated region
        $region91: #{tpu_custom_call.1} parent=77 // pred_check
          %p1408 = pneg %p164
        $region92: #{tpu_custom_call.1} parent=77 // pred_check_branch
          %1410 = sbr.rel (%p1408) target = $region94
        $region93: #{tpu_custom_call.1} parent=77 // pred_region
          %s1412 = ssub.s32 64, 64
          %1413 = vsyncadd [#allocation6], %s1412
          %s1415 = sshll.u32 [#allocation5], 4
          %s1416 = int_to_ptr.vmem [resolvable:$true] %s1415
          %1418 = dma.vmem_to_hbm [thread:$0]  %s1416, 64, %s6, [#allocation6]
        $region94: #{tpu_custom_call.1} parent=77 // pred_fallthru
          _
        // Predicated region
        $region95: #{tpu_custom_call.1} parent=77 // pred_check
          %p1419 = pneg %p190
        $region96: #{tpu_custom_call.1} parent=77 // pred_check_branch
          %1421 = sbr.rel (%p1419) target = $region98
        $region97: #{tpu_custom_call.1} parent=77 // pred_region
          %s1422 = smul.addr %s20, 8
          %s1423 = scalar_lea.vmem %s7, %s1422
          // Predicated region
          $region99: #{tpu_custom_call.1} parent=97 // pred_check
            _
          $region100: #{tpu_custom_call.1} parent=97 // pred_check_branch
            %1425 = sbr.rel (0) target = $region102
          $region101: #{tpu_custom_call.1} parent=97 // pred_region
            // Predicated region
            $region103: #{tpu_custom_call.1} parent=101 // pred_check
              _
            $region104: #{tpu_custom_call.1} parent=101 // pred_check_branch
              %1427 = sbr.rel (0) target = $region106
            $region105: #{tpu_custom_call.1} parent=101 // pred_region
              // Predicated region
              $region118: #{tpu_custom_call.1} parent=105 // pred_check
                _
              $region119: #{tpu_custom_call.1} parent=105 // pred_check_branch
                %1449 = sbr.rel (0) target = $region121
              $region120: #{tpu_custom_call.1} parent=105 // pred_region
                loop: start=0, step=1, limit=1
                $region122: #{tpu_custom_call.1} parent=120 // loop_pre_header
                  _
                $region123: #{tpu_custom_call.1} parent=120 // loop_header
                  %s1451 = sphi 0, %s1455
                  %p1452 = scmp.ge.s32.totalorder %s1451, 1
                  %s1456 = sphi %s1407, %s1407
                  %s1457 = sphi %s1423, %s1423
                $region124: #{tpu_custom_call.1} parent=120 // loop_header_branch
                  %1454 = sbr.rel (%p1452) target = $region128
                $region125: #{tpu_custom_call.1} parent=120 // loop_body
                  %v1458 = vld [vmem:[%s1456] sm:$0xff]
                  %1459 = vst [vmem:[%s1457] sm:$0xff] %v1458
                  %v1460 = vld [vmem:[%s1456 + $0x8] sm:$0xff]
                  %1461 = vst [vmem:[%s1457 + $0x18] sm:$0xff] %v1460
                  %v1462 = vld [vmem:[%s1456 + $0x10] sm:$0xff]
                  %1463 = vst [vmem:[%s1457 + $0x30] sm:$0xff] %v1462
                  %v1464 = vld [vmem:[%s1456 + $0x18] sm:$0xff]
                  %1465 = vst [vmem:[%s1457 + $0x48] sm:$0xff] %v1464
                $region126: #{tpu_custom_call.1} parent=120 // loop_footer
                  %s1455 = sadd.s32 1, %s1451
                $region127: #{tpu_custom_call.1} parent=120 // loop_footer_branch
                  %1450 = sbr.rel target = $region123
                $region128: #{tpu_custom_call.1} parent=120 // loop_exit
                  _
              $region121: #{tpu_custom_call.1} parent=105 // pred_fallthru
                _
              // Predicated region
              $region129: #{tpu_custom_call.1} parent=105 // pred_check
                _
              $region130: #{tpu_custom_call.1} parent=105 // pred_check_branch
                %1467 = sbr.rel target = $region132
              $region131: #{tpu_custom_call.1} parent=105 // pred_region
                _
              $region132: #{tpu_custom_call.1} parent=105 // pred_fallthru
                _
            $region106: #{tpu_custom_call.1} parent=101 // pred_fallthru
              _
            // Predicated region
            $region107: #{tpu_custom_call.1} parent=101 // pred_check
              _
            $region108: #{tpu_custom_call.1} parent=101 // pred_check_branch
              %1429 = sbr.rel target = $region110
            $region109: #{tpu_custom_call.1} parent=101 // pred_region
              %s1431 = ssub.s32 256, 1
              loop: start=0, step=1, limit=1
              $region111: #{tpu_custom_call.1} parent=109 // loop_pre_header
                _
              $region112: #{tpu_custom_call.1} parent=109 // loop_header
                %s1433 = sphi 0, %s1437
                %p1434 = scmp.ge.s32.totalorder %s1433, 1
                %s1438 = sphi %s1407, %s1407
                %s1439 = sphi %s1423, %s1423
              $region113: #{tpu_custom_call.1} parent=109 // loop_header_branch
                %1436 = sbr.rel (%p1434) target = $region117
              $region114: #{tpu_custom_call.1} parent=109 // loop_body
                %v1440 = vld [vmem:[%s1438] sm:%s1431]
                %1441 = vst [vmem:[%s1439] sm:%s1431] %v1440
                %v1442 = vld [vmem:[%s1438 + $0x8] sm:%s1431]
                %1443 = vst [vmem:[%s1439 + $0x18] sm:%s1431] %v1442
                %v1444 = vld [vmem:[%s1438 + $0x10] sm:%s1431]
                %1445 = vst [vmem:[%s1439 + $0x30] sm:%s1431] %v1444
                %v1446 = vld [vmem:[%s1438 + $0x18] sm:%s1431]
                %1447 = vst [vmem:[%s1439 + $0x48] sm:%s1431] %v1446
              $region115: #{tpu_custom_call.1} parent=109 // loop_footer
                %s1437 = sadd.s32 1, %s1433
              $region116: #{tpu_custom_call.1} parent=109 // loop_footer_branch
                %1432 = sbr.rel target = $region112
              $region117: #{tpu_custom_call.1} parent=109 // loop_exit
                _
            $region110: #{tpu_custom_call.1} parent=101 // pred_fallthru
              _
          $region102: #{tpu_custom_call.1} parent=97 // pred_fallthru
            _
          %1468 = vnop
        $region98: #{tpu_custom_call.1} parent=77 // pred_fallthru
          _
        // Predicated region
        $region133: #{tpu_custom_call.1} parent=77 // pred_check
          %p1469 = pneg %p164
        $region134: #{tpu_custom_call.1} parent=77 // pred_check_branch
          %1471 = sbr.rel (%p1469) target = $region136
        $region135: #{tpu_custom_call.1} parent=77 // pred_region
          %1472 = dma.done [#allocation6], 64
        $region136: #{tpu_custom_call.1} parent=77 // pred_fallthru
          _
      $region78: #{tpu_custom_call.1} parent=5 // pred_fallthru
        _
      %p1473 = scmp.le.s32.totalorder 2, %s15
      // Predicated region
      $region137: #{tpu_custom_call.1} parent=5 // pred_check
        %p1474 = pneg %p1473
      $region138: #{tpu_custom_call.1} parent=5 // pred_check_branch
        %1476 = sbr.rel (%p1474) target = $region140
      $region139: #{tpu_custom_call.1} parent=5 // pred_region
        %s1477 = ssub.s32 %s15, 2
        // Predicated region
        $region141: #{tpu_custom_call.1} parent=139 // pred_check
          %p1478 = pneg %p196
        $region142: #{tpu_custom_call.1} parent=139 // pred_check_branch
          %1480 = sbr.rel (%p1478) target = $region144
        $region143: #{tpu_custom_call.1} parent=139 // pred_region
          %s1481 = sand.u32 %s181, 1
          %s1482 = sand.u32 %s181, 1
          %s1483 = smul.addr %s1482, 32
          %s1484 = scalar_lea.vmem [#allocation7], %s1483
        $region144: #{tpu_custom_call.1} parent=139 // pred_fallthru
          _
      $region140: #{tpu_custom_call.1} parent=5 // pred_fallthru
        _
    $region6: #{tpu_custom_call.1} parent=1 // loop_footer
      %s19 = sadd.s32 1, %s15
    $region7: #{tpu_custom_call.1} parent=1 // loop_footer_branch
      %14 = sbr.rel target = $region3
    $region8: #{tpu_custom_call.1} parent=1 // loop_exit
      _
    %1485 = vsyncpa [#allocation6], 1
    %s1486 = scalar_lea.sflag [#allocation6], 1
    %1487 = vsyncpa %s1486, 1

</llo_original>
